<compile_context>
chip_gen: v6e
topology: v6e:2x2x1
jax: 0.10.0
libtpu: 0.0.40
codegen_flags: <defaults>
</compile_context>

<pallas_src>
import functools

import numpy as np
import jax
import jax.numpy as jnp
from jax import lax
from jax.experimental import pallas as pl
from jax.experimental.pallas import tpu as pltpu


# ----------------------------------------------------------------------------
# Pallas kernel
# ----------------------------------------------------------------------------
def _tcn_fused_kernel(x_ref, *refs, meta, kernel_size):
    """Whole TCN forward for one (Bb, T, Cin) batch tile.

    refs = per block [w1, b1, w2, b2 (+ wd, bd if downsample)] + [lin_w, lin_b]
           + [out_ref]
      w1 : (k, Cin,  Cout)  bf16      b1 : (1, Cout) f32
      w2 : (k, Cout, Cout)  bf16      b2 : (1, Cout) f32
      wd : (Cin, Cout)      bf16      bd : (1, Cout) f32
      lin_w : (C_last, O_pad) bf16    lin_b : (1, O_pad) f32
    """
    *w_refs, out_ref = refs
    k = kernel_size
    Bb, T, cin0 = x_ref.shape
    M = Bb * T

    h = x_ref[...].reshape(M, cin0)                     # f32 activations (M, C)

    # time-within-batch index (sublane iota); causal masks cached per shift.
    t_idx = lax.broadcasted_iota(jnp.int32, (M, 1), 0) % T
    mask_cache = {}

    def causal(p, s):
        """out[r] = p[r - s] if (r mod T) >= s else 0 (per-batch causal shift).

        Rolling the dot RESULT keeps batches independent: rows that would read
        across a batch boundary (r mod T < s) are exactly the masked rows.
        """
        if s == 0:
            return p
        if s not in mask_cache:
            mask_cache[s] = (t_idx >= s).astype(jnp.float32)
        return pltpu.roll(p, s, axis=0) * mask_cache[s]

    def dilated_conv(z16, w_ref, b_ref, d):
        """Causal dilated conv == k per-tap MXU dots (bf16 ops, f32 accumulate)."""
        acc = None
        for j in range(k):
            s = (k - 1 - j) * d                          # causal shift of tap j
            p = jnp.dot(z16, w_ref[j], preferred_element_type=jnp.float32)
            p = causal(p, s)
            acc = p if acc is None else acc + p
        return acc + b_ref[...]

    idx = 0
    for i, (cin, cout, has_ds) in enumerate(meta):
        d = 2 ** i
        w1, b1, w2, b2 = (w_refs[idx], w_refs[idx + 1],
                          w_refs[idx + 2], w_refs[idx + 3])
        idx += 4

        h16 = h.astype(jnp.bfloat16)
        # conv1 -> chomp -> relu  (dropout = identity)
        h1 = jnp.maximum(dilated_conv(h16, w1, b1, d), 0.0)
        # conv2 -> chomp -> relu
        h2 = jnp.maximum(dilated_conv(h1.astype(jnp.bfloat16), w2, b2, d), 0.0)

        # residual branch (1x1 downsample conv when Cin != Cout)
        if has_ds:
            wd, bd = w_refs[idx], w_refs[idx + 1]
            idx += 2
            res = jnp.dot(h16, wd[...],
                          preferred_element_type=jnp.float32) + bd[...]
        else:
            res = h                                      # cin == cout here

        h = jnp.maximum(h2 + res, 0.0)                   # final block ReLU

    # ---- final Linear; output is lane-padded to a multiple of 128 ----
    lin_w, lin_b = w_refs[idx], w_refs[idx + 1]
    o = jnp.dot(h.astype(jnp.bfloat16), lin_w[...],
                preferred_element_type=jnp.float32) + lin_b[...]
    out_ref[...] = o.reshape(Bb, T, o.shape[-1])


# ----------------------------------------------------------------------------
# Wrapper
# ----------------------------------------------------------------------------
def _prepare_weights(params, kernel_size, out_pad):
    """Cast conv/linear weights to bf16, pad the Linear output to out_pad lanes."""
    del kernel_size
    flat, meta = [], []
    for blk in params["blocks"]:
        w1 = blk["w1"]                                   # (k, Cin, Cout)
        _, cin, cout = w1.shape
        has_ds = "wd" in blk
        flat += [w1.astype(jnp.bfloat16), blk["b1"],
                 blk["w2"].astype(jnp.bfloat16), blk["b2"]]
        if has_ds:
            flat += [blk["wd"].astype(jnp.bfloat16), blk["bd"]]
        meta.append((cin, cout, has_ds))

    lw = params["lin_w"]                                 # (C_last, O)
    lb = params["lin_b"]                                 # (1, O)
    c_last, o = lw.shape
    lw_p = jnp.zeros((c_last, out_pad), lw.dtype).at[:, :o].set(lw)
    lb_p = jnp.zeros((1, out_pad), lb.dtype).at[:, :o].set(lb)
    flat += [lw_p.astype(jnp.bfloat16), lb_p]
    return flat, tuple(meta)


def _choose_batch_tile(B, T, *, target_m=256, min_grid=2):
    """Pick Bb so M = Bb*T fills the MXU, keeping >= min_grid steps for 2-TC v7x."""
    bb = max(1, min(B, max(1, target_m // max(T, 1))))
    if bb > 1 and -(-B // bb) < min_grid:                # cdiv(B, bb) < min_grid
        bb = max(1, B // min_grid)
    return bb


def tcn_forward(x, params, *, kernel_size, channel_last=True):
    """Equivalent to TCN.forward.  x: (B, T, Cin) if channel_last else (B, Cin, T)."""
    h = x if channel_last else jnp.transpose(x, (0, 2, 1))
    B, T, cin = h.shape
    O = params["lin_w"].shape[-1]
    o_pad = ((O + 127) // 128) * 128                     # lane-dense output store

    bb = _choose_batch_tile(B, T)
    flat, meta = _prepare_weights(params, kernel_size, o_pad)

    kernel = functools.partial(_tcn_fused_kernel, meta=meta,
                               kernel_size=kernel_size)

    in_specs = [pl.BlockSpec((bb, T, cin), lambda b: (b, 0, 0))]
    for w in flat:   # weights: full-array blocks, constant index -> loaded once
        in_specs.append(pl.BlockSpec(w.shape, lambda b, _n=w.ndim: (0,) * _n))

    # Explicit VMEM budget: activations live-set + double-buffered weights & I/O,
    # with 2x headroom, capped at 64 MiB so the same kernel fits v7x.
    c_max = max([cin, o_pad] + [m[1] for m in meta])
    act_bytes = 12 * bb * T * c_max * 4
    w_bytes = 2 * sum(int(np.prod(w.shape)) * w.dtype.itemsize for w in flat)
    io_bytes = 2 * bb * T * (cin + o_pad) * 4
    vmem_limit = int(min(64 * 2 ** 20,
                         max(8 * 2 ** 20, 2 * (act_bytes + w_bytes + io_bytes))))

    out_padded = pl.pallas_call(
        kernel,
        out_shape=jax.ShapeDtypeStruct((B, T, o_pad), jnp.float32),
        grid=(pl.cdiv(B, bb),),
        in_specs=in_specs,
        out_specs=pl.BlockSpec((bb, T, o_pad), lambda b: (b, 0, 0)),
        compiler_params=pltpu.CompilerParams(
            dimension_semantics=("parallel",),
            vmem_limit_bytes=vmem_limit),
    )(h, *flat)
    return out_padded[:, :, :O]


# ----------------------------------------------------------------------------
# Deterministic parameter construction (synthetic, mirrors module __init__)
# ----------------------------------------------------------------------------
def make_params(key, input_size, num_channels, kernel_size, output_size):
    keys = iter(jax.random.split(key, 64))

    def xavier(k_, shape, gain):  # shape = (Cout, Cin, K)  (torch Conv1d layout)
        fan_in = shape[1] * shape[2]
        fan_out = shape[0] * shape[2]
        a = gain * np.sqrt(6.0 / (fan_in + fan_out))
        return jax.random.uniform(k_, shape, jnp.float32, -a, a)

    def weight_norm(v, g):  # effective weight of torch weight_norm (dim=0)
        return g * v / jnp.sqrt(jnp.sum(v ** 2, axis=(1, 2), keepdims=True))

    blocks_k, blocks_t = [], []
    cin = input_size
    for cout in num_channels:
        v1 = xavier(next(keys), (cout, cin, kernel_size), np.sqrt(2))
        g1 = jax.random.uniform(next(keys), (cout, 1, 1), jnp.float32, 0.5, 1.5)
        w1 = weight_norm(v1, g1)
        b1 = 0.1 * jax.random.normal(next(keys), (cout,), jnp.float32)

        v2 = xavier(next(keys), (cout, cout, kernel_size), np.sqrt(2))
        g2 = jax.random.uniform(next(keys), (cout, 1, 1), jnp.float32, 0.5, 1.5)
        w2 = weight_norm(v2, g2)
        b2 = 0.1 * jax.random.normal(next(keys), (cout,), jnp.float32)

        blk_k = dict(w1=jnp.transpose(w1, (2, 1, 0)), b1=b1[None, :],   # (K,Cin,Cout)
                     w2=jnp.transpose(w2, (2, 1, 0)), b2=b2[None, :])
        blk_t = dict(w1_t=w1, b1_v=b1, w2_t=w2, b2_v=b2)

        if cin != cout:  # downsample 1x1 conv
            wd = xavier(next(keys), (cout, cin, 1), np.sqrt(2))
            bd = 0.1 * jax.random.normal(next(keys), (cout,), jnp.float32)
            blk_k["wd"] = jnp.transpose(wd, (2, 1, 0))[0]   # (Cin, Cout)
            blk_k["bd"] = bd[None, :]
            blk_t["wd_t"] = wd
            blk_t["bd_v"] = bd

        blocks_k.append(blk_k)
        blocks_t.append(blk_t)
        cin = cout

    lw = 0.01 * jax.random.normal(next(keys), (output_size, cin), jnp.float32)
    lb = 0.1 * jax.random.normal(next(keys), (output_size,), jnp.float32)

    params = dict(blocks=blocks_k, lin_w=lw.T, lin_b=lb[None, :])
    raw = dict(blocks=blocks_t, lin_w_t=lw, lin_b_v=lb)
    return params, raw


# ----------------------------------------------------------------------------
# Pure-JAX reference (uses lax.conv_general_dilated) for correctness check
# ----------------------------------------------------------------------------
def reference_forward(x, raw, *, kernel_size):
    h = jnp.transpose(x, (0, 2, 1))  # (B, C, T), matching the PyTorch path
    for i, blk in enumerate(raw["blocks"]):
        d = 2 ** i
        pad = (kernel_size - 1) * d
        T = h.shape[2]

        def conv(z, w, b, dil, p):
            y = lax.conv_general_dilated(
                z, w, window_strides=(1,), padding=[(p, p)],
                rhs_dilation=(dil,), dimension_numbers=('NCH', 'OIH', 'NCH'),
                precision=lax.Precision.HIGHEST)
            return y[:, :, :T] + b[None, :, None]  # chomp + bias

        h1 = jax.nn.relu(conv(h, blk["w1_t"], blk["b1_v"], d, pad))
        h2 = jax.nn.relu(conv(h1, blk["w2_t"], blk["b2_v"], d, pad))
        if "wd_t" in blk:
            res = conv(h, blk["wd_t"], blk["bd_v"], 1, 0)
        else:
            res = h
        h = jax.nn.relu(h2 + res)
    y1 = jnp.transpose(h, (0, 2, 1))  # (B, T, C_last)
    return y1 @ raw["lin_w_t"].T + raw["lin_b_v"]


# ----------------------------------------------------------------------------
if __name__ == "__main__":
    # TCN(input_size=4, output_size=8, num_channels=[32, 32], kernel_size=2, dropout=0.2)
    input_size, output_size = 4, 8
    num_channels = [32, 32]
    kernel_size = 2
    B, T = 8, 32

    key = jax.random.PRNGKey(0)
    kx, kp = jax.random.split(key)
    x = jax.random.normal(kx, (B, T, input_size), jnp.float32)  # channel_last=True

    params, raw = make_params(kp, input_size, num_channels, kernel_size, output_size)

    out = tcn_forward(x, params, kernel_size=kernel_size, channel_last=True)
    out = jax.block_until_ready(out)

    ref = reference_forward(x, raw, kernel_size=kernel_size)
    # tolerance loosened vs. f32-HIGHEST reference: kernel uses bf16 MXU operands
    # with f32 accumulation.
    np.testing.assert_allclose(np.asarray(out), np.asarray(ref), rtol=3e-2, atol=3e-2)
    assert out.shape == (B, T, output_size)

    print("KERNEL_OK")
</pallas_src>

<mosaic_0001>
module attributes {stable_mosaic.version = 11 : i64} {
  func.func @_tcn_fused_kernel(%arg0: i32, %arg1: memref<4x32x4xf32, #tpu.memory_space<vmem>>, %arg2: memref<2x4x32xbf16, #tpu.memory_space<vmem>>, %arg3: memref<1x32xf32, #tpu.memory_space<vmem>>, %arg4: memref<2x32x32xbf16, #tpu.memory_space<vmem>>, %arg5: memref<1x32xf32, #tpu.memory_space<vmem>>, %arg6: memref<4x32xbf16, #tpu.memory_space<vmem>>, %arg7: memref<1x32xf32, #tpu.memory_space<vmem>>, %arg8: memref<2x32x32xbf16, #tpu.memory_space<vmem>>, %arg9: memref<1x32xf32, #tpu.memory_space<vmem>>, %arg10: memref<2x32x32xbf16, #tpu.memory_space<vmem>>, %arg11: memref<1x32xf32, #tpu.memory_space<vmem>>, %arg12: memref<32x128xbf16, #tpu.memory_space<vmem>>, %arg13: memref<1x128xf32, #tpu.memory_space<vmem>>, %arg14: memref<4x32x128xf32, #tpu.memory_space<vmem>>) attributes {dimension_semantics = [#tpu.dimension_semantics<parallel>], iteration_bounds = array<i64: 2>, scalar_prefetch = 0 : i64, scratch_operands = 0 : i64, tpu.core_type = #tpu.core_type<tc>, window_params = [{transform_indices = @transform_0, window_bounds = array<i64: 4, 32, 4>}, {pipeline_mode = #tpu.pipeline_mode<synchronous>, transform_indices = @transform_1, window_bounds = array<i64: 2, 4, 32>}, {pipeline_mode = #tpu.pipeline_mode<synchronous>, transform_indices = @transform_2, window_bounds = array<i64: 1, 32>}, {pipeline_mode = #tpu.pipeline_mode<synchronous>, transform_indices = @transform_3, window_bounds = array<i64: 2, 32, 32>}, {pipeline_mode = #tpu.pipeline_mode<synchronous>, transform_indices = @transform_4, window_bounds = array<i64: 1, 32>}, {pipeline_mode = #tpu.pipeline_mode<synchronous>, transform_indices = @transform_5, window_bounds = array<i64: 4, 32>}, {pipeline_mode = #tpu.pipeline_mode<synchronous>, transform_indices = @transform_6, window_bounds = array<i64: 1, 32>}, {pipeline_mode = #tpu.pipeline_mode<synchronous>, transform_indices = @transform_7, window_bounds = array<i64: 2, 32, 32>}, {pipeline_mode = #tpu.pipeline_mode<synchronous>, transform_indices = @transform_8, window_bounds = array<i64: 1, 32>}, {pipeline_mode = #tpu.pipeline_mode<synchronous>, transform_indices = @transform_9, window_bounds = array<i64: 2, 32, 32>}, {pipeline_mode = #tpu.pipeline_mode<synchronous>, transform_indices = @transform_10, window_bounds = array<i64: 1, 32>}, {pipeline_mode = #tpu.pipeline_mode<synchronous>, transform_indices = @transform_11, window_bounds = array<i64: 32, 128>}, {pipeline_mode = #tpu.pipeline_mode<synchronous>, transform_indices = @transform_12, window_bounds = array<i64: 1, 128>}, {transform_indices = @transform_13, window_bounds = array<i64: 4, 32, 128>}]} {
    %c0 = arith.constant 0 : index
    %c0_0 = arith.constant 0 : index
    %c0_1 = arith.constant 0 : index
    %0 = vector.load %arg1[%c0, %c0_0, %c0_1] : memref<4x32x4xf32, #tpu.memory_space<vmem>>, vector<4x32x4xf32>
    %1 = vector.shape_cast %0 : vector<4x32x4xf32> to vector<128x4xf32>
    %2 = tpu.iota {dimensions = array<i32: 0>} : vector<128x1xi32>
    %c32_i32 = arith.constant 32 : i32
    %c0_i32 = arith.constant 0 : i32
    %3 = arith.cmpi eq, %c32_i32, %c0_i32 : i32
    %c1_i32 = arith.constant 1 : i32
    %4 = arith.select %3, %c1_i32, %c32_i32 : i32
    %5 = vector.broadcast %4 : i32 to vector<128x1xi32>
    %6 = arith.remsi %2, %5 : vector<128x1xi32>
    %c0_i32_2 = arith.constant 0 : i32
    %7 = vector.broadcast %c0_i32_2 : i32 to vector<128x1xi32>
    %8 = arith.cmpi ne, %6, %7 : vector<128x1xi32>
    %c0_i32_3 = arith.constant 0 : i32
    %9 = vector.broadcast %c0_i32_3 : i32 to vector<128x1xi32>
    %10 = arith.cmpi slt, %6, %9 : vector<128x1xi32>
    %c0_i32_4 = arith.constant 0 : i32
    %11 = arith.cmpi slt, %4, %c0_i32_4 : i32
    %12 = vector.broadcast %11 : i1 to vector<128x1xi1>
    %13 = vector.broadcast %12 : vector<128x1xi1> to vector<128x1xi1>
    %14 = arith.xori %10, %13 : vector<128x1xi1>
    %15 = arith.andi %14, %8 : vector<128x1xi1>
    %16 = vector.broadcast %4 : i32 to vector<128x1xi32>
    %17 = arith.addi %6, %16 : vector<128x1xi32>
    %18 = arith.select %15, %17, %6 : vector<128x1xi1>, vector<128x1xi32>
    %19 = arith.truncf %1 : vector<128x4xf32> to vector<128x4xbf16>
    %c0_5 = arith.constant 0 : index
    %c0_6 = arith.constant 0 : index
    %c0_7 = arith.constant 0 : index
    %20 = vector.load %arg2[%c0_5, %c0_6, %c0_7] : memref<2x4x32xbf16, #tpu.memory_space<vmem>>, vector<1x4x32xbf16>
    %21 = vector.shape_cast %20 : vector<1x4x32xbf16> to vector<4x32xbf16>
    %cst = arith.constant dense<0.000000e+00> : vector<128x32xf32>
    %22 = tpu.matmul %19, %21, %cst {dimension_numbers = #tpu.dot_dimension_numbers<[1], [0], [0], [1], [0, 0, 1, 1], [], []>} : vector<128x4xbf16>, vector<4x32xbf16>, vector<128x32xf32> -> vector<128x32xf32>
    %c1_i32_8 = arith.constant 1 : i32
    %23 = vector.broadcast %c1_i32_8 : i32 to vector<128x1xi32>
    %24 = arith.cmpi sge, %18, %23 : vector<128x1xi32>
    %25 = arith.extui %24 : vector<128x1xi1> to vector<128x1xi32>
    %26 = arith.sitofp %25 : vector<128x1xi32> to vector<128x1xf32>
    %c1_i32_9 = arith.constant 1 : i32
    %27 = tpu.dynamic_rotate %22 by %c1_i32_9 dim 0 : vector<128x32xf32>, i32 -> vector<128x32xf32>
    %28 = vector.broadcast %26 : vector<128x1xf32> to vector<128x32xf32>
    %29 = arith.mulf %27, %28 : vector<128x32xf32>
    %c1 = arith.constant 1 : index
    %c0_10 = arith.constant 0 : index
    %c0_11 = arith.constant 0 : index
    %30 = vector.load %arg2[%c1, %c0_10, %c0_11] : memref<2x4x32xbf16, #tpu.memory_space<vmem>>, vector<1x4x32xbf16>
    %31 = vector.shape_cast %30 : vector<1x4x32xbf16> to vector<4x32xbf16>
    %cst_12 = arith.constant dense<0.000000e+00> : vector<128x32xf32>
    %32 = tpu.matmul %19, %31, %cst_12 {dimension_numbers = #tpu.dot_dimension_numbers<[1], [0], [0], [1], [0, 0, 1, 1], [], []>} : vector<128x4xbf16>, vector<4x32xbf16>, vector<128x32xf32> -> vector<128x32xf32>
    %33 = arith.addf %29, %32 : vector<128x32xf32>
    %c0_13 = arith.constant 0 : index
    %c0_14 = arith.constant 0 : index
    %34 = vector.load %arg3[%c0_13, %c0_14] : memref<1x32xf32, #tpu.memory_space<vmem>>, vector<1x32xf32>
    %35 = vector.broadcast %34 : vector<1x32xf32> to vector<128x32xf32>
    %36 = arith.addf %33, %35 : vector<128x32xf32>
    %cst_15 = arith.constant 0.000000e+00 : f32
    %37 = vector.broadcast %cst_15 : f32 to vector<128x32xf32>
    %38 = arith.maximumf %36, %37 : vector<128x32xf32>
    %39 = arith.truncf %38 : vector<128x32xf32> to vector<128x32xbf16>
    %c0_16 = arith.constant 0 : index
    %c0_17 = arith.constant 0 : index
    %c0_18 = arith.constant 0 : index
    %40 = vector.load %arg4[%c0_16, %c0_17, %c0_18] : memref<2x32x32xbf16, #tpu.memory_space<vmem>>, vector<1x32x32xbf16>
    %41 = vector.shape_cast %40 : vector<1x32x32xbf16> to vector<32x32xbf16>
    %cst_19 = arith.constant dense<0.000000e+00> : vector<128x32xf32>
    %42 = tpu.matmul %39, %41, %cst_19 {dimension_numbers = #tpu.dot_dimension_numbers<[1], [0], [0], [1], [0, 0, 1, 1], [], []>} : vector<128x32xbf16>, vector<32x32xbf16>, vector<128x32xf32> -> vector<128x32xf32>
    %c1_i32_20 = arith.constant 1 : i32
    %43 = tpu.dynamic_rotate %42 by %c1_i32_20 dim 0 : vector<128x32xf32>, i32 -> vector<128x32xf32>
    %44 = vector.broadcast %26 : vector<128x1xf32> to vector<128x32xf32>
    %45 = arith.mulf %43, %44 : vector<128x32xf32>
    %c1_21 = arith.constant 1 : index
    %c0_22 = arith.constant 0 : index
    %c0_23 = arith.constant 0 : index
    %46 = vector.load %arg4[%c1_21, %c0_22, %c0_23] : memref<2x32x32xbf16, #tpu.memory_space<vmem>>, vector<1x32x32xbf16>
    %47 = vector.shape_cast %46 : vector<1x32x32xbf16> to vector<32x32xbf16>
    %cst_24 = arith.constant dense<0.000000e+00> : vector<128x32xf32>
    %48 = tpu.matmul %39, %47, %cst_24 {dimension_numbers = #tpu.dot_dimension_numbers<[1], [0], [0], [1], [0, 0, 1, 1], [], []>} : vector<128x32xbf16>, vector<32x32xbf16>, vector<128x32xf32> -> vector<128x32xf32>
    %49 = arith.addf %45, %48 : vector<128x32xf32>
    %c0_25 = arith.constant 0 : index
    %c0_26 = arith.constant 0 : index
    %50 = vector.load %arg5[%c0_25, %c0_26] : memref<1x32xf32, #tpu.memory_space<vmem>>, vector<1x32xf32>
    %51 = vector.broadcast %50 : vector<1x32xf32> to vector<128x32xf32>
    %52 = arith.addf %49, %51 : vector<128x32xf32>
    %cst_27 = arith.constant 0.000000e+00 : f32
    %53 = vector.broadcast %cst_27 : f32 to vector<128x32xf32>
    %54 = arith.maximumf %52, %53 : vector<128x32xf32>
    %c0_28 = arith.constant 0 : index
    %c0_29 = arith.constant 0 : index
    %55 = vector.load %arg6[%c0_28, %c0_29] : memref<4x32xbf16, #tpu.memory_space<vmem>>, vector<4x32xbf16>
    %cst_30 = arith.constant dense<0.000000e+00> : vector<128x32xf32>
    %56 = tpu.matmul %19, %55, %cst_30 {dimension_numbers = #tpu.dot_dimension_numbers<[1], [0], [0], [1], [0, 0, 1, 1], [], []>} : vector<128x4xbf16>, vector<4x32xbf16>, vector<128x32xf32> -> vector<128x32xf32>
    %c0_31 = arith.constant 0 : index
    %c0_32 = arith.constant 0 : index
    %57 = vector.load %arg7[%c0_31, %c0_32] : memref<1x32xf32, #tpu.memory_space<vmem>>, vector<1x32xf32>
    %58 = vector.broadcast %57 : vector<1x32xf32> to vector<128x32xf32>
    %59 = arith.addf %56, %58 : vector<128x32xf32>
    %60 = arith.addf %54, %59 : vector<128x32xf32>
    %cst_33 = arith.constant 0.000000e+00 : f32
    %61 = vector.broadcast %cst_33 : f32 to vector<128x32xf32>
    %62 = arith.maximumf %60, %61 : vector<128x32xf32>
    %63 = arith.truncf %62 : vector<128x32xf32> to vector<128x32xbf16>
    %c0_34 = arith.constant 0 : index
    %c0_35 = arith.constant 0 : index
    %c0_36 = arith.constant 0 : index
    %64 = vector.load %arg8[%c0_34, %c0_35, %c0_36] : memref<2x32x32xbf16, #tpu.memory_space<vmem>>, vector<1x32x32xbf16>
    %65 = vector.shape_cast %64 : vector<1x32x32xbf16> to vector<32x32xbf16>
    %cst_37 = arith.constant dense<0.000000e+00> : vector<128x32xf32>
    %66 = tpu.matmul %63, %65, %cst_37 {dimension_numbers = #tpu.dot_dimension_numbers<[1], [0], [0], [1], [0, 0, 1, 1], [], []>} : vector<128x32xbf16>, vector<32x32xbf16>, vector<128x32xf32> -> vector<128x32xf32>
    %c2_i32 = arith.constant 2 : i32
    %67 = vector.broadcast %c2_i32 : i32 to vector<128x1xi32>
    %68 = arith.cmpi sge, %18, %67 : vector<128x1xi32>
    %69 = arith.extui %68 : vector<128x1xi1> to vector<128x1xi32>
    %70 = arith.sitofp %69 : vector<128x1xi32> to vector<128x1xf32>
    %c2_i32_38 = arith.constant 2 : i32
    %71 = tpu.dynamic_rotate %66 by %c2_i32_38 dim 0 : vector<128x32xf32>, i32 -> vector<128x32xf32>
    %72 = vector.broadcast %70 : vector<128x1xf32> to vector<128x32xf32>
    %73 = arith.mulf %71, %72 : vector<128x32xf32>
    %c1_39 = arith.constant 1 : index
    %c0_40 = arith.constant 0 : index
    %c0_41 = arith.constant 0 : index
    %74 = vector.load %arg8[%c1_39, %c0_40, %c0_41] : memref<2x32x32xbf16, #tpu.memory_space<vmem>>, vector<1x32x32xbf16>
    %75 = vector.shape_cast %74 : vector<1x32x32xbf16> to vector<32x32xbf16>
    %cst_42 = arith.constant dense<0.000000e+00> : vector<128x32xf32>
    %76 = tpu.matmul %63, %75, %cst_42 {dimension_numbers = #tpu.dot_dimension_numbers<[1], [0], [0], [1], [0, 0, 1, 1], [], []>} : vector<128x32xbf16>, vector<32x32xbf16>, vector<128x32xf32> -> vector<128x32xf32>
    %77 = arith.addf %73, %76 : vector<128x32xf32>
    %c0_43 = arith.constant 0 : index
    %c0_44 = arith.constant 0 : index
    %78 = vector.load %arg9[%c0_43, %c0_44] : memref<1x32xf32, #tpu.memory_space<vmem>>, vector<1x32xf32>
    %79 = vector.broadcast %78 : vector<1x32xf32> to vector<128x32xf32>
    %80 = arith.addf %77, %79 : vector<128x32xf32>
    %cst_45 = arith.constant 0.000000e+00 : f32
    %81 = vector.broadcast %cst_45 : f32 to vector<128x32xf32>
    %82 = arith.maximumf %80, %81 : vector<128x32xf32>
    %83 = arith.truncf %82 : vector<128x32xf32> to vector<128x32xbf16>
    %c0_46 = arith.constant 0 : index
    %c0_47 = arith.constant 0 : index
    %c0_48 = arith.constant 0 : index
    %84 = vector.load %arg10[%c0_46, %c0_47, %c0_48] : memref<2x32x32xbf16, #tpu.memory_space<vmem>>, vector<1x32x32xbf16>
    %85 = vector.shape_cast %84 : vector<1x32x32xbf16> to vector<32x32xbf16>
    %cst_49 = arith.constant dense<0.000000e+00> : vector<128x32xf32>
    %86 = tpu.matmul %83, %85, %cst_49 {dimension_numbers = #tpu.dot_dimension_numbers<[1], [0], [0], [1], [0, 0, 1, 1], [], []>} : vector<128x32xbf16>, vector<32x32xbf16>, vector<128x32xf32> -> vector<128x32xf32>
    %c2_i32_50 = arith.constant 2 : i32
    %87 = tpu.dynamic_rotate %86 by %c2_i32_50 dim 0 : vector<128x32xf32>, i32 -> vector<128x32xf32>
    %88 = vector.broadcast %70 : vector<128x1xf32> to vector<128x32xf32>
    %89 = arith.mulf %87, %88 : vector<128x32xf32>
    %c1_51 = arith.constant 1 : index
    %c0_52 = arith.constant 0 : index
    %c0_53 = arith.constant 0 : index
    %90 = vector.load %arg10[%c1_51, %c0_52, %c0_53] : memref<2x32x32xbf16, #tpu.memory_space<vmem>>, vector<1x32x32xbf16>
    %91 = vector.shape_cast %90 : vector<1x32x32xbf16> to vector<32x32xbf16>
    %cst_54 = arith.constant dense<0.000000e+00> : vector<128x32xf32>
    %92 = tpu.matmul %83, %91, %cst_54 {dimension_numbers = #tpu.dot_dimension_numbers<[1], [0], [0], [1], [0, 0, 1, 1], [], []>} : vector<128x32xbf16>, vector<32x32xbf16>, vector<128x32xf32> -> vector<128x32xf32>
    %93 = arith.addf %89, %92 : vector<128x32xf32>
    %c0_55 = arith.constant 0 : index
    %c0_56 = arith.constant 0 : index
    %94 = vector.load %arg11[%c0_55, %c0_56] : memref<1x32xf32, #tpu.memory_space<vmem>>, vector<1x32xf32>
    %95 = vector.broadcast %94 : vector<1x32xf32> to vector<128x32xf32>
    %96 = arith.addf %93, %95 : vector<128x32xf32>
    %cst_57 = arith.constant 0.000000e+00 : f32
    %97 = vector.broadcast %cst_57 : f32 to vector<128x32xf32>
    %98 = arith.maximumf %96, %97 : vector<128x32xf32>
    %99 = arith.addf %98, %62 : vector<128x32xf32>
    %cst_58 = arith.constant 0.000000e+00 : f32
    %100 = vector.broadcast %cst_58 : f32 to vector<128x32xf32>
    %101 = arith.maximumf %99, %100 : vector<128x32xf32>
    %102 = arith.truncf %101 : vector<128x32xf32> to vector<128x32xbf16>
    %c0_59 = arith.constant 0 : index
    %c0_60 = arith.constant 0 : index
    %103 = vector.load %arg12[%c0_59, %c0_60] : memref<32x128xbf16, #tpu.memory_space<vmem>>, vector<32x128xbf16>
    %cst_61 = arith.constant dense<0.000000e+00> : vector<128x128xf32>
    %104 = tpu.matmul %102, %103, %cst_61 {dimension_numbers = #tpu.dot_dimension_numbers<[1], [0], [0], [1], [0, 0, 1, 1], [], []>} : vector<128x32xbf16>, vector<32x128xbf16>, vector<128x128xf32> -> vector<128x128xf32>
    %c0_62 = arith.constant 0 : index
    %c0_63 = arith.constant 0 : index
    %105 = vector.load %arg13[%c0_62, %c0_63] : memref<1x128xf32, #tpu.memory_space<vmem>>, vector<1x128xf32>
    %106 = vector.broadcast %105 : vector<1x128xf32> to vector<128x128xf32>
    %107 = arith.addf %104, %106 : vector<128x128xf32>
    %108 = vector.shape_cast %107 : vector<128x128xf32> to vector<4x32x128xf32>
    %c0_64 = arith.constant 0 : index
    %c0_65 = arith.constant 0 : index
    %c0_66 = arith.constant 0 : index
    %109 = vector.load %arg14[%c0_64, %c0_65, %c0_66] : memref<4x32x128xf32, #tpu.memory_space<vmem>>, vector<4x32x128xf32>
    tpu.vector_store %arg14[%c0_64, %c0_65, %c0_66], %108 {strides = array<i32>} : memref<4x32x128xf32, #tpu.memory_space<vmem>>, vector<4x32x128xf32>,
    return
  }
  func.func @transform_0(%arg0: i32) -> (i32, i32, i32) {
    %c0_i32 = arith.constant 0 : i32
    %c0_i32_0 = arith.constant 0 : i32
    %c0_i32_1 = arith.constant 0 : i32
    return %arg0, %c0_i32, %c0_i32_0 : i32, i32, i32
  }
  func.func @transform_1(%arg0: i32) -> (i32, i32, i32) {
    %c0_i32 = arith.constant 0 : i32
    %c0_i32_0 = arith.constant 0 : i32
    %c0_i32_1 = arith.constant 0 : i32
    %c0_i32_2 = arith.constant 0 : i32
    return %c0_i32, %c0_i32_0, %c0_i32_1 : i32, i32, i32
  }
  func.func @transform_2(%arg0: i32) -> (i32, i32) {
    %c0_i32 = arith.constant 0 : i32
    %c0_i32_0 = arith.constant 0 : i32
    %c0_i32_1 = arith.constant 0 : i32
    return %c0_i32, %c0_i32_0 : i32, i32
  }
  func.func @transform_3(%arg0: i32) -> (i32, i32, i32) {
    %c0_i32 = arith.constant 0 : i32
    %c0_i32_0 = arith.constant 0 : i32
    %c0_i32_1 = arith.constant 0 : i32
    %c0_i32_2 = arith.constant 0 : i32
    return %c0_i32, %c0_i32_0, %c0_i32_1 : i32, i32, i32
  }
  func.func @transform_4(%arg0: i32) -> (i32, i32) {
    %c0_i32 = arith.constant 0 : i32
    %c0_i32_0 = arith.constant 0 : i32
    %c0_i32_1 = arith.constant 0 : i32
    return %c0_i32, %c0_i32_0 : i32, i32
  }
  func.func @transform_5(%arg0: i32) -> (i32, i32) {
    %c0_i32 = arith.constant 0 : i32
    %c0_i32_0 = arith.constant 0 : i32
    %c0_i32_1 = arith.constant 0 : i32
    return %c0_i32, %c0_i32_0 : i32, i32
  }
  func.func @transform_6(%arg0: i32) -> (i32, i32) {
    %c0_i32 = arith.constant 0 : i32
    %c0_i32_0 = arith.constant 0 : i32
    %c0_i32_1 = arith.constant 0 : i32
    return %c0_i32, %c0_i32_0 : i32, i32
  }
  func.func @transform_7(%arg0: i32) -> (i32, i32, i32) {
    %c0_i32 = arith.constant 0 : i32
    %c0_i32_0 = arith.constant 0 : i32
    %c0_i32_1 = arith.constant 0 : i32
    %c0_i32_2 = arith.constant 0 : i32
    return %c0_i32, %c0_i32_0, %c0_i32_1 : i32, i32, i32
  }
  func.func @transform_8(%arg0: i32) -> (i32, i32) {
    %c0_i32 = arith.constant 0 : i32
    %c0_i32_0 = arith.constant 0 : i32
    %c0_i32_1 = arith.constant 0 : i32
    return %c0_i32, %c0_i32_0 : i32, i32
  }
  func.func @transform_9(%arg0: i32) -> (i32, i32, i32) {
    %c0_i32 = arith.constant 0 : i32
    %c0_i32_0 = arith.constant 0 : i32
    %c0_i32_1 = arith.constant 0 : i32
    %c0_i32_2 = arith.constant 0 : i32
    return %c0_i32, %c0_i32_0, %c0_i32_1 : i32, i32, i32
  }
  func.func @transform_10(%arg0: i32) -> (i32, i32) {
    %c0_i32 = arith.constant 0 : i32
    %c0_i32_0 = arith.constant 0 : i32
    %c0_i32_1 = arith.constant 0 : i32
    return %c0_i32, %c0_i32_0 : i32, i32
  }
  func.func @transform_11(%arg0: i32) -> (i32, i32) {
    %c0_i32 = arith.constant 0 : i32
    %c0_i32_0 = arith.constant 0 : i32
    %c0_i32_1 = arith.constant 0 : i32
    return %c0_i32, %c0_i32_0 : i32, i32
  }
  func.func @transform_12(%arg0: i32) -> (i32, i32) {
    %c0_i32 = arith.constant 0 : i32
    %c0_i32_0 = arith.constant 0 : i32
    %c0_i32_1 = arith.constant 0 : i32
    return %c0_i32, %c0_i32_0 : i32, i32
  }
  func.func @transform_13(%arg0: i32) -> (i32, i32, i32) {
    %c0_i32 = arith.constant 0 : i32
    %c0_i32_0 = arith.constant 0 : i32
    %c0_i32_1 = arith.constant 0 : i32
    return %arg0, %c0_i32, %c0_i32_0 : i32, i32, i32
  }
}

</mosaic_0001>

<llo_original>
// kernel: tpu_custom_call.1
$region0: #{tpu_custom_call.1}
  #allocation0 [shape = 'u32[]', space=smem, size = 0x4, offset = 0x4, fixed_abs, tag = 'smem constant byte address 0x4 - core index']
  #allocation1 [shape = 'u32[144,128]{1,0:T(1,128)}', space=vmem, size = 0x12000, scoped, tag = 'internal scratch']
  %s0 = inlined_call_operand.vmem [shape: f32[8,32,4], index: 0, kind: input, shape index: {}]
  %s1 = inlined_call_operand.vmem [shape: bf16[2,4,32], index: 1, kind: input, shape index: {}]
  %s2 = inlined_call_operand.vmem [shape: f32[1,32], index: 2, kind: input, shape index: {}]
  %s3 = inlined_call_operand.vmem [shape: bf16[2,32,32], index: 3, kind: input, shape index: {}]
  %s4 = inlined_call_operand.vmem [shape: f32[1,32], index: 4, kind: input, shape index: {}]
  %s5 = inlined_call_operand.vmem [shape: bf16[4,32], index: 5, kind: input, shape index: {}]
  %s6 = inlined_call_operand.vmem [shape: f32[1,32], index: 6, kind: input, shape index: {}]
  %s7 = inlined_call_operand.vmem [shape: bf16[2,32,32], index: 7, kind: input, shape index: {}]
  %s8 = inlined_call_operand.vmem [shape: f32[1,32], index: 8, kind: input, shape index: {}]
  %s9 = inlined_call_operand.vmem [shape: bf16[2,32,32], index: 9, kind: input, shape index: {}]
  %s10 = inlined_call_operand.vmem [shape: f32[1,32], index: 10, kind: input, shape index: {}]
  %s11 = inlined_call_operand.vmem [shape: bf16[32,128], index: 11, kind: input, shape index: {}]
  %s12 = inlined_call_operand.vmem [shape: f32[1,128], index: 12, kind: input, shape index: {}]
  %s13 = inlined_call_operand.hbm [shape: f32[8,32,128], index: 13, kind: output, shape index: {}]
  %s14 = sld [smem:[#allocation0]]
  $region85: #{tpu_custom_call.1} parent=0
    _
  %s16 = ssub.s32 1, %s14
  %s17 = scalar_select 0, %s16, %s14
  $region1: #{tpu_custom_call.1} parent=0
    #allocation2 [shape = 'u8[131072]{0}', space=vmem, size = 0x20000, scoped, tag = 'output window, operand 0']
    #allocation3 [shape = 's32[2]{0}', space=sflag, size = 0x8, scoped, tag = 'scoped memory for tpu_custom_call.1']
    %18 = vsyncpa [#allocation3], 0
    %s19 = scalar_lea.sflag [#allocation3], 1
    %20 = vsyncpa %s19, 0
    loop: start=0, step=1, limit=4
    $region2: #{tpu_custom_call.1} parent=1 // loop_pre_header
      _
    $region3: #{tpu_custom_call.1} parent=1 // loop_header
      %s22 = sphi 0, %s26
      %p23 = scmp.ge.s32.totalorder %s22, 4
      %s32 = sphi 0, %s34
      %s35 = sphi 0, %s32
      %s36 = sphi 0, %s35
      %s52 = sphi 0, %s36
      %s56 = sphi 0, %s56
      %s58 = sphi 0, %s56
      %s59 = sphi 0, %s58
      %s73 = sphi 0, %s59
      %s77 = sphi 0, %s77
      %s79 = sphi 0, %s77
      %s80 = sphi 0, %s79
      %s94 = sphi 0, %s80
      %s98 = sphi 0, %s98
      %s100 = sphi 0, %s98
      %s101 = sphi 0, %s100
      %s115 = sphi 0, %s101
      %s119 = sphi 0, %s119
      %s121 = sphi 0, %s119
      %s122 = sphi 0, %s121
      %s136 = sphi 0, %s122
      %s140 = sphi 0, %s140
      %s142 = sphi 0, %s140
      %s143 = sphi 0, %s142
      %s157 = sphi 0, %s143
      %s161 = sphi 0, %s161
      %s163 = sphi 0, %s161
      %s164 = sphi 0, %s163
      %s178 = sphi 0, %s164
      %s182 = sphi 0, %s182
      %s184 = sphi 0, %s182
      %s185 = sphi 0, %s184
      %s199 = sphi 0, %s185
      %s203 = sphi 0, %s203
      %s205 = sphi 0, %s203
      %s206 = sphi 0, %s205
      %s220 = sphi 0, %s206
      %s224 = sphi 0, %s224
      %s226 = sphi 0, %s224
      %s227 = sphi 0, %s226
      %s241 = sphi 0, %s227
      %s245 = sphi 0, %s245
      %s247 = sphi 0, %s245
      %s248 = sphi 0, %s247
      %s262 = sphi 0, %s248
      %s266 = sphi 0, %s266
      %s268 = sphi 0, %s266
      %s269 = sphi 0, %s268
      %s283 = sphi 0, %s269
      %s287 = sphi 0, %s287
      %s289 = sphi 0, %s287
      %s290 = sphi 0, %s289
      %s304 = sphi 0, %s290
      %s310 = sphi 0, %s312
      %s313 = sphi 0, %s310
      %s314 = sphi 0, %s313
      %s330 = sphi 0, %s314
    $region4: #{tpu_custom_call.1} parent=1 // loop_header_branch
      %25 = sbr.rel (%p23) target = $region8
    $region5: #{tpu_custom_call.1} parent=1 // loop_body
      %s27 = ssub.s32 %s22, 1
      %s28 = ssub.s32 %s22, 2
      %s29 = sadd.s32 %s22, 1
      %s30 = ssub.s32 %s22, %s29
      %p31 = scmp.eq.s32.totalorder %s30, 0
      %s33 = sadd.s32 %s32, 1
      %s34 = scalar_select %p31, %s32, %s33
      %p37 = pneg %p31
      %p38 = scmp.eq.s32.totalorder %s22, 1
      %p39 = por %p37, %p38
      %p40 = scmp.ne.s32.totalorder %s32, %s35
      %p41 = scmp.eq.s32.totalorder %s22, 0
      %p42 = por %p40, %p41
      %p43 = scmp.ne.s32.totalorder %s32, %s35
      %p44 = scmp.eq.s32.totalorder %s27, 1
      %p45 = por %p43, %p44
      %p46 = scmp.ne.s32.totalorder %s35, %s36
      %p47 = scmp.eq.s32.totalorder %s27, 0
      %p48 = por %p46, %p47
      %p49 = scmp.ne.s32.totalorder %s35, %s36
      %p50 = scmp.eq.s32.totalorder %s28, 1
      %p51 = por %p49, %p50
      %p53 = scmp.ne.s32.totalorder %s36, %s52
      %p54 = scmp.eq.s32.totalorder %s28, 0
      %p55 = por %p53, %p54
      %s57 = sadd.s32 %s56, 1
      %p60 = scmp.eq.s32.totalorder %s22, 1
      %p61 = scmp.ne.s32.totalorder %s56, %s58
      %p62 = scmp.eq.s32.totalorder %s22, 0
      %p63 = por %p61, %p62
      %p64 = scmp.ne.s32.totalorder %s56, %s58
      %p65 = scmp.eq.s32.totalorder %s27, 1
      %p66 = por %p64, %p65
      %p67 = scmp.ne.s32.totalorder %s58, %s59
      %p68 = scmp.eq.s32.totalorder %s27, 0
      %p69 = por %p67, %p68
      %p70 = scmp.ne.s32.totalorder %s58, %s59
      %p71 = scmp.eq.s32.totalorder %s28, 1
      %p72 = por %p70, %p71
      %p74 = scmp.ne.s32.totalorder %s59, %s73
      %p75 = scmp.eq.s32.totalorder %s28, 0
      %p76 = por %p74, %p75
      %s78 = sadd.s32 %s77, 1
      %p81 = scmp.eq.s32.totalorder %s22, 1
      %p82 = scmp.ne.s32.totalorder %s77, %s79
      %p83 = scmp.eq.s32.totalorder %s22, 0
      %p84 = por %p82, %p83
      %p85 = scmp.ne.s32.totalorder %s77, %s79
      %p86 = scmp.eq.s32.totalorder %s27, 1
      %p87 = por %p85, %p86
      %p88 = scmp.ne.s32.totalorder %s79, %s80
      %p89 = scmp.eq.s32.totalorder %s27, 0
      %p90 = por %p88, %p89
      %p91 = scmp.ne.s32.totalorder %s79, %s80
      %p92 = scmp.eq.s32.totalorder %s28, 1
      %p93 = por %p91, %p92
      %p95 = scmp.ne.s32.totalorder %s80, %s94
      %p96 = scmp.eq.s32.totalorder %s28, 0
      %p97 = por %p95, %p96
      %s99 = sadd.s32 %s98, 1
      %p102 = scmp.eq.s32.totalorder %s22, 1
      %p103 = scmp.ne.s32.totalorder %s98, %s100
      %p104 = scmp.eq.s32.totalorder %s22, 0
      %p105 = por %p103, %p104
      %p106 = scmp.ne.s32.totalorder %s98, %s100
      %p107 = scmp.eq.s32.totalorder %s27, 1
      %p108 = por %p106, %p107
      %p109 = scmp.ne.s32.totalorder %s100, %s101
      %p110 = scmp.eq.s32.totalorder %s27, 0
      %p111 = por %p109, %p110
      %p112 = scmp.ne.s32.totalorder %s100, %s101
      %p113 = scmp.eq.s32.totalorder %s28, 1
      %p114 = por %p112, %p113
      %p116 = scmp.ne.s32.totalorder %s101, %s115
      %p117 = scmp.eq.s32.totalorder %s28, 0
      %p118 = por %p116, %p117
      %s120 = sadd.s32 %s119, 1
      %p123 = scmp.eq.s32.totalorder %s22, 1
      %p124 = scmp.ne.s32.totalorder %s119, %s121
      %p125 = scmp.eq.s32.totalorder %s22, 0
      %p126 = por %p124, %p125
      %p127 = scmp.ne.s32.totalorder %s119, %s121
      %p128 = scmp.eq.s32.totalorder %s27, 1
      %p129 = por %p127, %p128
      %p130 = scmp.ne.s32.totalorder %s121, %s122
      %p131 = scmp.eq.s32.totalorder %s27, 0
      %p132 = por %p130, %p131
      %p133 = scmp.ne.s32.totalorder %s121, %s122
      %p134 = scmp.eq.s32.totalorder %s28, 1
      %p135 = por %p133, %p134
      %p137 = scmp.ne.s32.totalorder %s122, %s136
      %p138 = scmp.eq.s32.totalorder %s28, 0
      %p139 = por %p137, %p138
      %s141 = sadd.s32 %s140, 1
      %p144 = scmp.eq.s32.totalorder %s22, 1
      %p145 = scmp.ne.s32.totalorder %s140, %s142
      %p146 = scmp.eq.s32.totalorder %s22, 0
      %p147 = por %p145, %p146
      %p148 = scmp.ne.s32.totalorder %s140, %s142
      %p149 = scmp.eq.s32.totalorder %s27, 1
      %p150 = por %p148, %p149
      %p151 = scmp.ne.s32.totalorder %s142, %s143
      %p152 = scmp.eq.s32.totalorder %s27, 0
      %p153 = por %p151, %p152
      %p154 = scmp.ne.s32.totalorder %s142, %s143
      %p155 = scmp.eq.s32.totalorder %s28, 1
      %p156 = por %p154, %p155
      %p158 = scmp.ne.s32.totalorder %s143, %s157
      %p159 = scmp.eq.s32.totalorder %s28, 0
      %p160 = por %p158, %p159
      %s162 = sadd.s32 %s161, 1
      %p165 = scmp.eq.s32.totalorder %s22, 1
      %p166 = scmp.ne.s32.totalorder %s161, %s163
      %p167 = scmp.eq.s32.totalorder %s22, 0
      %p168 = por %p166, %p167
      %p169 = scmp.ne.s32.totalorder %s161, %s163
      %p170 = scmp.eq.s32.totalorder %s27, 1
      %p171 = por %p169, %p170
      %p172 = scmp.ne.s32.totalorder %s163, %s164
      %p173 = scmp.eq.s32.totalorder %s27, 0
      %p174 = por %p172, %p173
      %p175 = scmp.ne.s32.totalorder %s163, %s164
      %p176 = scmp.eq.s32.totalorder %s28, 1
      %p177 = por %p175, %p176
      %p179 = scmp.ne.s32.totalorder %s164, %s178
      %p180 = scmp.eq.s32.totalorder %s28, 0
      %p181 = por %p179, %p180
      %s183 = sadd.s32 %s182, 1
      %p186 = scmp.eq.s32.totalorder %s22, 1
      %p187 = scmp.ne.s32.totalorder %s182, %s184
      %p188 = scmp.eq.s32.totalorder %s22, 0
      %p189 = por %p187, %p188
      %p190 = scmp.ne.s32.totalorder %s182, %s184
      %p191 = scmp.eq.s32.totalorder %s27, 1
      %p192 = por %p190, %p191
      %p193 = scmp.ne.s32.totalorder %s184, %s185
      %p194 = scmp.eq.s32.totalorder %s27, 0
      %p195 = por %p193, %p194
      %p196 = scmp.ne.s32.totalorder %s184, %s185
      %p197 = scmp.eq.s32.totalorder %s28, 1
      %p198 = por %p196, %p197
      %p200 = scmp.ne.s32.totalorder %s185, %s199
      %p201 = scmp.eq.s32.totalorder %s28, 0
      %p202 = por %p200, %p201
      %s204 = sadd.s32 %s203, 1
      %p207 = scmp.eq.s32.totalorder %s22, 1
      %p208 = scmp.ne.s32.totalorder %s203, %s205
      %p209 = scmp.eq.s32.totalorder %s22, 0
      %p210 = por %p208, %p209
      %p211 = scmp.ne.s32.totalorder %s203, %s205
      %p212 = scmp.eq.s32.totalorder %s27, 1
      %p213 = por %p211, %p212
      %p214 = scmp.ne.s32.totalorder %s205, %s206
      %p215 = scmp.eq.s32.totalorder %s27, 0
      %p216 = por %p214, %p215
      %p217 = scmp.ne.s32.totalorder %s205, %s206
      %p218 = scmp.eq.s32.totalorder %s28, 1
      %p219 = por %p217, %p218
      %p221 = scmp.ne.s32.totalorder %s206, %s220
      %p222 = scmp.eq.s32.totalorder %s28, 0
      %p223 = por %p221, %p222
      %s225 = sadd.s32 %s224, 1
      %p228 = scmp.eq.s32.totalorder %s22, 1
      %p229 = scmp.ne.s32.totalorder %s224, %s226
      %p230 = scmp.eq.s32.totalorder %s22, 0
      %p231 = por %p229, %p230
      %p232 = scmp.ne.s32.totalorder %s224, %s226
      %p233 = scmp.eq.s32.totalorder %s27, 1
      %p234 = por %p232, %p233
      %p235 = scmp.ne.s32.totalorder %s226, %s227
      %p236 = scmp.eq.s32.totalorder %s27, 0
      %p237 = por %p235, %p236
      %p238 = scmp.ne.s32.totalorder %s226, %s227
      %p239 = scmp.eq.s32.totalorder %s28, 1
      %p240 = por %p238, %p239
      %p242 = scmp.ne.s32.totalorder %s227, %s241
      %p243 = scmp.eq.s32.totalorder %s28, 0
      %p244 = por %p242, %p243
      %s246 = sadd.s32 %s245, 1
      %p249 = scmp.eq.s32.totalorder %s22, 1
      %p250 = scmp.ne.s32.totalorder %s245, %s247
      %p251 = scmp.eq.s32.totalorder %s22, 0
      %p252 = por %p250, %p251
      %p253 = scmp.ne.s32.totalorder %s245, %s247
      %p254 = scmp.eq.s32.totalorder %s27, 1
      %p255 = por %p253, %p254
      %p256 = scmp.ne.s32.totalorder %s247, %s248
      %p257 = scmp.eq.s32.totalorder %s27, 0
      %p258 = por %p256, %p257
      %p259 = scmp.ne.s32.totalorder %s247, %s248
      %p260 = scmp.eq.s32.totalorder %s28, 1
      %p261 = por %p259, %p260
      %p263 = scmp.ne.s32.totalorder %s248, %s262
      %p264 = scmp.eq.s32.totalorder %s28, 0
      %p265 = por %p263, %p264
      %s267 = sadd.s32 %s266, 1
      %p270 = scmp.eq.s32.totalorder %s22, 1
      %p271 = scmp.ne.s32.totalorder %s266, %s268
      %p272 = scmp.eq.s32.totalorder %s22, 0
      %p273 = por %p271, %p272
      %p274 = scmp.ne.s32.totalorder %s266, %s268
      %p275 = scmp.eq.s32.totalorder %s27, 1
      %p276 = por %p274, %p275
      %p277 = scmp.ne.s32.totalorder %s268, %s269
      %p278 = scmp.eq.s32.totalorder %s27, 0
      %p279 = por %p277, %p278
      %p280 = scmp.ne.s32.totalorder %s268, %s269
      %p281 = scmp.eq.s32.totalorder %s28, 1
      %p282 = por %p280, %p281
      %p284 = scmp.ne.s32.totalorder %s269, %s283
      %p285 = scmp.eq.s32.totalorder %s28, 0
      %p286 = por %p284, %p285
      %s288 = sadd.s32 %s287, 1
      %p291 = scmp.eq.s32.totalorder %s22, 1
      %p292 = scmp.ne.s32.totalorder %s287, %s289
      %p293 = scmp.eq.s32.totalorder %s22, 0
      %p294 = por %p292, %p293
      %p295 = scmp.ne.s32.totalorder %s287, %s289
      %p296 = scmp.eq.s32.totalorder %s27, 1
      %p297 = por %p295, %p296
      %p298 = scmp.ne.s32.totalorder %s289, %s290
      %p299 = scmp.eq.s32.totalorder %s27, 0
      %p300 = por %p298, %p299
      %p301 = scmp.ne.s32.totalorder %s289, %s290
      %p302 = scmp.eq.s32.totalorder %s28, 1
      %p303 = por %p301, %p302
      %p305 = scmp.ne.s32.totalorder %s290, %s304
      %p306 = scmp.eq.s32.totalorder %s28, 0
      %p307 = por %p305, %p306
      %s308 = ssub.s32 %s22, %s29
      %p309 = scmp.eq.s32.totalorder %s308, 0
      %s311 = sadd.s32 %s310, 1
      %s312 = scalar_select %p309, %s310, %s311
      %p315 = pneg %p309
      %p316 = scmp.eq.s32.totalorder %s22, 1
      %p317 = por %p315, %p316
      %p318 = scmp.ne.s32.totalorder %s310, %s313
      %p319 = scmp.eq.s32.totalorder %s22, 0
      %p320 = por %p318, %p319
      %p321 = scmp.ne.s32.totalorder %s310, %s313
      %p322 = scmp.eq.s32.totalorder %s27, 1
      %p323 = por %p321, %p322
      %p324 = scmp.ne.s32.totalorder %s313, %s314
      %p325 = scmp.eq.s32.totalorder %s27, 0
      %p326 = por %p324, %p325
      %p327 = scmp.ne.s32.totalorder %s313, %s314
      %p328 = scmp.eq.s32.totalorder %s28, 1
      %p329 = por %p327, %p328
      %p331 = scmp.ne.s32.totalorder %s314, %s330
      %p332 = scmp.eq.s32.totalorder %s28, 0
      %p333 = por %p331, %p332
      %p334 = scmp.le.s32.totalorder 1, %s22
      %p335 = scmp.lt.s32.totalorder %s22, 3
      %p336 = pnand %p334, %p335
      %p337 = pneg %p336
      // Predicated region
      $region9: #{tpu_custom_call.1} parent=5 // pred_check
        _
      $region10: #{tpu_custom_call.1} parent=5 // pred_check_branch
        %339 = sbr.rel (%p336) target = $region12
      $region11: #{tpu_custom_call.1} parent=5 // pred_region
        %s340 = ssub.s32 %s22, 1
        // Predicated region
        $region13: #{tpu_custom_call.1} parent=11 // pred_check
          %p341 = pneg %p69
        $region14: #{tpu_custom_call.1} parent=11 // pred_check_branch
          %343 = sbr.rel (%p341) target = $region16
        $region15: #{tpu_custom_call.1} parent=11 // pred_region
          _
        $region16: #{tpu_custom_call.1} parent=11 // pred_fallthru
          _
        // Predicated region
        $region17: #{tpu_custom_call.1} parent=11 // pred_check
          %p344 = pneg %p90
        $region18: #{tpu_custom_call.1} parent=11 // pred_check_branch
          %346 = sbr.rel (%p344) target = $region20
        $region19: #{tpu_custom_call.1} parent=11 // pred_region
          _
        $region20: #{tpu_custom_call.1} parent=11 // pred_fallthru
          _
        // Predicated region
        $region21: #{tpu_custom_call.1} parent=11 // pred_check
          %p347 = pneg %p111
        $region22: #{tpu_custom_call.1} parent=11 // pred_check_branch
          %349 = sbr.rel (%p347) target = $region24
        $region23: #{tpu_custom_call.1} parent=11 // pred_region
          _
        $region24: #{tpu_custom_call.1} parent=11 // pred_fallthru
          _
        // Predicated region
        $region25: #{tpu_custom_call.1} parent=11 // pred_check
          %p350 = pneg %p132
        $region26: #{tpu_custom_call.1} parent=11 // pred_check_branch
          %352 = sbr.rel (%p350) target = $region28
        $region27: #{tpu_custom_call.1} parent=11 // pred_region
          _
        $region28: #{tpu_custom_call.1} parent=11 // pred_fallthru
          _
        // Predicated region
        $region29: #{tpu_custom_call.1} parent=11 // pred_check
          %p353 = pneg %p153
        $region30: #{tpu_custom_call.1} parent=11 // pred_check_branch
          %355 = sbr.rel (%p353) target = $region32
        $region31: #{tpu_custom_call.1} parent=11 // pred_region
          _
        $region32: #{tpu_custom_call.1} parent=11 // pred_fallthru
          _
        // Predicated region
        $region33: #{tpu_custom_call.1} parent=11 // pred_check
          %p356 = pneg %p174
        $region34: #{tpu_custom_call.1} parent=11 // pred_check_branch
          %358 = sbr.rel (%p356) target = $region36
        $region35: #{tpu_custom_call.1} parent=11 // pred_region
          _
        $region36: #{tpu_custom_call.1} parent=11 // pred_fallthru
          _
        // Predicated region
        $region37: #{tpu_custom_call.1} parent=11 // pred_check
          %p359 = pneg %p195
        $region38: #{tpu_custom_call.1} parent=11 // pred_check_branch
          %361 = sbr.rel (%p359) target = $region40
        $region39: #{tpu_custom_call.1} parent=11 // pred_region
          _
        $region40: #{tpu_custom_call.1} parent=11 // pred_fallthru
          _
        // Predicated region
        $region41: #{tpu_custom_call.1} parent=11 // pred_check
          %p362 = pneg %p216
        $region42: #{tpu_custom_call.1} parent=11 // pred_check_branch
          %364 = sbr.rel (%p362) target = $region44
        $region43: #{tpu_custom_call.1} parent=11 // pred_region
          _
        $region44: #{tpu_custom_call.1} parent=11 // pred_fallthru
          _
        // Predicated region
        $region45: #{tpu_custom_call.1} parent=11 // pred_check
          %p365 = pneg %p237
        $region46: #{tpu_custom_call.1} parent=11 // pred_check_branch
          %367 = sbr.rel (%p365) target = $region48
        $region47: #{tpu_custom_call.1} parent=11 // pred_region
          _
        $region48: #{tpu_custom_call.1} parent=11 // pred_fallthru
          _
        // Predicated region
        $region49: #{tpu_custom_call.1} parent=11 // pred_check
          %p368 = pneg %p258
        $region50: #{tpu_custom_call.1} parent=11 // pred_check_branch
          %370 = sbr.rel (%p368) target = $region52
        $region51: #{tpu_custom_call.1} parent=11 // pred_region
          _
        $region52: #{tpu_custom_call.1} parent=11 // pred_fallthru
          _
        // Predicated region
        $region53: #{tpu_custom_call.1} parent=11 // pred_check
          %p371 = pneg %p279
        $region54: #{tpu_custom_call.1} parent=11 // pred_check_branch
          %373 = sbr.rel (%p371) target = $region56
        $region55: #{tpu_custom_call.1} parent=11 // pred_region
          _
        $region56: #{tpu_custom_call.1} parent=11 // pred_fallthru
          _
        // Predicated region
        $region57: #{tpu_custom_call.1} parent=11 // pred_check
          %p374 = pneg %p300
        $region58: #{tpu_custom_call.1} parent=11 // pred_check_branch
          %376 = sbr.rel (%p374) target = $region60
        $region59: #{tpu_custom_call.1} parent=11 // pred_region
          _
        $region60: #{tpu_custom_call.1} parent=11 // pred_fallthru
          _
      $region12: #{tpu_custom_call.1} parent=5 // pred_fallthru
        _
      %p377 = scmp.lt.s32.totalorder %s22, 2
      // Predicated region
      $region61: #{tpu_custom_call.1} parent=5 // pred_check
        %p378 = pneg %p377
      $region62: #{tpu_custom_call.1} parent=5 // pred_check_branch
        %380 = sbr.rel (%p378) target = $region64
      $region63: #{tpu_custom_call.1} parent=5 // pred_region
        // Predicated region
        $region65: #{tpu_custom_call.1} parent=63 // pred_check
          %p381 = pneg %p42
        $region66: #{tpu_custom_call.1} parent=63 // pred_check_branch
          %383 = sbr.rel (%p381) target = $region68
        $region67: #{tpu_custom_call.1} parent=63 // pred_region
          %s384 = smul.u32 4, %s22
          %p385 = scmp.lt.s32.totalorder %s384, 7
          %s386 = scalar_select %p385, %s384, 7
          %s387 = smul.addr %s386, 4
          %s388 = smul.addr %s387, 8
          %s389 = scalar_lea.vmem %s0, %s388
          %s390 = smul.u32 4, %s22
        $region68: #{tpu_custom_call.1} parent=63 // pred_fallthru
          _
      $region64: #{tpu_custom_call.1} parent=5 // pred_fallthru
        _
      %p391 = scmp.le.s32.totalorder 1, %s22
      %p392 = scmp.lt.s32.totalorder %s22, 3
      %p393 = pnand %p391, %p392
      %p394 = pneg %p393
      // Predicated region
      $region69: #{tpu_custom_call.1} parent=5 // pred_check
        _
      $region70: #{tpu_custom_call.1} parent=5 // pred_check_branch
        %396 = sbr.rel (%p393) target = $region72
      $region71: #{tpu_custom_call.1} parent=5 // pred_region
        %s397 = ssub.s32 %s22, 1
        %s398 = smul.u32 4, %s27
        %p399 = scmp.lt.s32.totalorder %s398, 7
        %s400 = scalar_select %p399, %s398, 7
        %s401 = smul.addr %s400, 4
        %s402 = smul.addr %s401, 8
        %s403 = scalar_lea.vmem %s0, %s402
        %p404 = pneg %p48
        %p405 = pneg %p45
        %p406 = pneg %p69
        %p407 = pneg %p66
        %p408 = pneg %p90
        %p409 = pneg %p87
        %p410 = pneg %p111
        %p411 = pneg %p108
        %p412 = pneg %p132
        %p413 = pneg %p129
        %p414 = pneg %p153
        %p415 = pneg %p150
        %p416 = pneg %p174
        %p417 = pneg %p171
        %p418 = pneg %p195
        %p419 = pneg %p192
        %p420 = pneg %p216
        %p421 = pneg %p213
        %p422 = pneg %p237
        %p423 = pneg %p234
        %p424 = pneg %p258
        %p425 = pneg %p255
        %p426 = pneg %p279
        %p427 = pneg %p276
        %p428 = pneg %p300
        %p429 = pneg %p297
        %p430 = pneg %p326
        %p431 = pneg %p323
        %s432 = sand.u32 %s313, 1
        %s433 = scalar_lea.sflag [#allocation3], %s432
        %s434 = sand.u32 %s313, 1
        %s435 = smul.addr %s434, 128
        %s436 = scalar_lea.vmem [#allocation2], %s435
        %s437 = smul.u32 4, %s27
        %p438 = scmp.lt.s32.totalorder %s437, 7
        %s439 = scalar_select %p438, %s437, 7
        %s440 = smul.addr %s439, 4
        %s441 = smul.addr %s440, 8
        %s442 = scalar_lea.vmem %s0, %s441
        %s443 = smul.u32 4, %s27
        %s444 = smul.u32 4, %s27
        %v446 = vld [vmem:[%s442] sm:$0xff]
        %v447 = vld [vmem:[%s442 + $0x8] sm:$0xff]
        %v448 = vld [vmem:[%s442 + $0x10] sm:$0xff]
        %v449 = vld [vmem:[%s442 + $0x18] sm:$0xff]
        %v450 = vld [vmem:[%s442 + $0x20] sm:$0xff]
        %v451 = vld [vmem:[%s442 + $0x28] sm:$0xff]
        %v452 = vld [vmem:[%s442 + $0x30] sm:$0xff]
        %v453 = vld [vmem:[%s442 + $0x38] sm:$0xff]
        %v454 = vld [vmem:[%s442 + $0x40] sm:$0xff]
        %v455 = vld [vmem:[%s442 + $0x48] sm:$0xff]
        %v456 = vld [vmem:[%s442 + $0x50] sm:$0xff]
        %v457 = vld [vmem:[%s442 + $0x58] sm:$0xff]
        %v458 = vld [vmem:[%s442 + $0x60] sm:$0xff]
        %v459 = vld [vmem:[%s442 + $0x68] sm:$0xff]
        %v460 = vld [vmem:[%s442 + $0x70] sm:$0xff]
        %v461 = vld [vmem:[%s442 + $0x78] sm:$0xff]
        %v462 = vlaneseq
        %v463 = vshrl.u32 %v462, 7
        %v464 = vadd.s32 %v463, 8
        %v465 = vadd.s32 %v463, 16
        %v466 = vadd.s32 %v463, 24
        %v467 = vadd.s32 %v463, 32
        %v468 = vadd.s32 %v463, 40
        %v469 = vadd.s32 %v463, 48
        %v470 = vadd.s32 %v463, 56
        %v471 = vadd.s32 %v463, 64
        %v472 = vadd.s32 %v463, 72
        %v473 = vadd.s32 %v463, 80
        %v474 = vadd.s32 %v463, 88
        %v475 = vadd.s32 %v463, 96
        %v476 = vadd.s32 %v463, 104
        %v477 = vadd.s32 %v463, 112
        %v478 = vadd.s32 %v463, 120
        %vm479 = vcmp.lt.s32.totalorder %v463, 0
        %v480 = vsub.s32 0, %v463
        %v481 = vsel %vm479, %v480, %v463
        %v482 = vshrl.u32 %v481, 5
        %v483 = vand.u32 %v481, 31
        %v484 = vsub.s32 0, %v483
        %v485 = vsel %vm479, %v484, %v483
        %vm486 = vcmp.lt.s32.totalorder %v464, 0
        %v487 = vsub.s32 0, %v464
        %v488 = vsel %vm486, %v487, %v464
        %v489 = vshrl.u32 %v488, 5
        %v490 = vand.u32 %v488, 31
        %v491 = vsub.s32 0, %v490
        %v492 = vsel %vm486, %v491, %v490
        %vm493 = vcmp.lt.s32.totalorder %v465, 0
        %v494 = vsub.s32 0, %v465
        %v495 = vsel %vm493, %v494, %v465
        %v496 = vshrl.u32 %v495, 5
        %v497 = vand.u32 %v495, 31
        %v498 = vsub.s32 0, %v497
        %v499 = vsel %vm493, %v498, %v497
        %vm500 = vcmp.lt.s32.totalorder %v466, 0
        %v501 = vsub.s32 0, %v466
        %v502 = vsel %vm500, %v501, %v466
        %v503 = vshrl.u32 %v502, 5
        %v504 = vand.u32 %v502, 31
        %v505 = vsub.s32 0, %v504
        %v506 = vsel %vm500, %v505, %v504
        %vm507 = vcmp.lt.s32.totalorder %v467, 0
        %v508 = vsub.s32 0, %v467
        %v509 = vsel %vm507, %v508, %v467
        %v510 = vshrl.u32 %v509, 5
        %v511 = vand.u32 %v509, 31
        %v512 = vsub.s32 0, %v511
        %v513 = vsel %vm507, %v512, %v511
        %vm514 = vcmp.lt.s32.totalorder %v468, 0
        %v515 = vsub.s32 0, %v468
        %v516 = vsel %vm514, %v515, %v468
        %v517 = vshrl.u32 %v516, 5
        %v518 = vand.u32 %v516, 31
        %v519 = vsub.s32 0, %v518
        %v520 = vsel %vm514, %v519, %v518
        %vm521 = vcmp.lt.s32.totalorder %v469, 0
        %v522 = vsub.s32 0, %v469
        %v523 = vsel %vm521, %v522, %v469
        %v524 = vshrl.u32 %v523, 5
        %v525 = vand.u32 %v523, 31
        %v526 = vsub.s32 0, %v525
        %v527 = vsel %vm521, %v526, %v525
        %vm528 = vcmp.lt.s32.totalorder %v470, 0
        %v529 = vsub.s32 0, %v470
        %v530 = vsel %vm528, %v529, %v470
        %v531 = vshrl.u32 %v530, 5
        %v532 = vand.u32 %v530, 31
        %v533 = vsub.s32 0, %v532
        %v534 = vsel %vm528, %v533, %v532
        %vm535 = vcmp.lt.s32.totalorder %v471, 0
        %v536 = vsub.s32 0, %v471
        %v537 = vsel %vm535, %v536, %v471
        %v538 = vshrl.u32 %v537, 5
        %v539 = vand.u32 %v537, 31
        %v540 = vsub.s32 0, %v539
        %v541 = vsel %vm535, %v540, %v539
        %vm542 = vcmp.lt.s32.totalorder %v472, 0
        %v543 = vsub.s32 0, %v472
        %v544 = vsel %vm542, %v543, %v472
        %v545 = vshrl.u32 %v544, 5
        %v546 = vand.u32 %v544, 31
        %v547 = vsub.s32 0, %v546
        %v548 = vsel %vm542, %v547, %v546
        %vm549 = vcmp.lt.s32.totalorder %v473, 0
        %v550 = vsub.s32 0, %v473
        %v551 = vsel %vm549, %v550, %v473
        %v552 = vshrl.u32 %v551, 5
        %v553 = vand.u32 %v551, 31
        %v554 = vsub.s32 0, %v553
        %v555 = vsel %vm549, %v554, %v553
        %vm556 = vcmp.lt.s32.totalorder %v474, 0
        %v557 = vsub.s32 0, %v474
        %v558 = vsel %vm556, %v557, %v474
        %v559 = vshrl.u32 %v558, 5
        %v560 = vand.u32 %v558, 31
        %v561 = vsub.s32 0, %v560
        %v562 = vsel %vm556, %v561, %v560
        %vm563 = vcmp.lt.s32.totalorder %v475, 0
        %v564 = vsub.s32 0, %v475
        %v565 = vsel %vm563, %v564, %v475
        %v566 = vshrl.u32 %v565, 5
        %v567 = vand.u32 %v565, 31
        %v568 = vsub.s32 0, %v567
        %v569 = vsel %vm563, %v568, %v567
        %vm570 = vcmp.lt.s32.totalorder %v476, 0
        %v571 = vsub.s32 0, %v476
        %v572 = vsel %vm570, %v571, %v476
        %v573 = vshrl.u32 %v572, 5
        %v574 = vand.u32 %v572, 31
        %v575 = vsub.s32 0, %v574
        %v576 = vsel %vm570, %v575, %v574
        %vm577 = vcmp.lt.s32.totalorder %v477, 0
        %v578 = vsub.s32 0, %v477
        %v579 = vsel %vm577, %v578, %v477
        %v580 = vshrl.u32 %v579, 5
        %v581 = vand.u32 %v579, 31
        %v582 = vsub.s32 0, %v581
        %v583 = vsel %vm577, %v582, %v581
        %vm584 = vcmp.lt.s32.totalorder %v478, 0
        %v585 = vsub.s32 0, %v478
        %v586 = vsel %vm584, %v585, %v478
        %v587 = vshrl.u32 %v586, 5
        %v588 = vand.u32 %v586, 31
        %v589 = vsub.s32 0, %v588
        %v590 = vsel %vm584, %v589, %v588
        %vm591 = vcmp.ne.s32.totalorder %v485, 0
        %vm592 = vcmp.ne.s32.totalorder %v492, 0
        %vm593 = vcmp.ne.s32.totalorder %v499, 0
        %vm594 = vcmp.ne.s32.totalorder %v506, 0
        %vm595 = vcmp.ne.s32.totalorder %v513, 0
        %vm596 = vcmp.ne.s32.totalorder %v520, 0
        %vm597 = vcmp.ne.s32.totalorder %v527, 0
        %vm598 = vcmp.ne.s32.totalorder %v534, 0
        %vm599 = vcmp.ne.s32.totalorder %v541, 0
        %vm600 = vcmp.ne.s32.totalorder %v548, 0
        %vm601 = vcmp.ne.s32.totalorder %v555, 0
        %vm602 = vcmp.ne.s32.totalorder %v562, 0
        %vm603 = vcmp.ne.s32.totalorder %v569, 0
        %vm604 = vcmp.ne.s32.totalorder %v576, 0
        %vm605 = vcmp.ne.s32.totalorder %v583, 0
        %vm606 = vcmp.ne.s32.totalorder %v590, 0
        %vm607 = vcmp.lt.s32.totalorder %v485, 0
        %vm608 = vcmp.lt.s32.totalorder %v492, 0
        %vm609 = vcmp.lt.s32.totalorder %v499, 0
        %vm610 = vcmp.lt.s32.totalorder %v506, 0
        %vm611 = vcmp.lt.s32.totalorder %v513, 0
        %vm612 = vcmp.lt.s32.totalorder %v520, 0
        %vm613 = vcmp.lt.s32.totalorder %v527, 0
        %vm614 = vcmp.lt.s32.totalorder %v534, 0
        %vm615 = vcmp.lt.s32.totalorder %v541, 0
        %vm616 = vcmp.lt.s32.totalorder %v548, 0
        %vm617 = vcmp.lt.s32.totalorder %v555, 0
        %vm618 = vcmp.lt.s32.totalorder %v562, 0
        %vm619 = vcmp.lt.s32.totalorder %v569, 0
        %vm620 = vcmp.lt.s32.totalorder %v576, 0
        %vm621 = vcmp.lt.s32.totalorder %v583, 0
        %vm622 = vcmp.lt.s32.totalorder %v590, 0
        %vm623 = vmand %vm607, %vm591
        %vm624 = vmand %vm608, %vm592
        %vm625 = vmand %vm609, %vm593
        %vm626 = vmand %vm610, %vm594
        %vm627 = vmand %vm611, %vm595
        %vm628 = vmand %vm612, %vm596
        %vm629 = vmand %vm613, %vm597
        %vm630 = vmand %vm614, %vm598
        %vm631 = vmand %vm615, %vm599
        %vm632 = vmand %vm616, %vm600
        %vm633 = vmand %vm617, %vm601
        %vm634 = vmand %vm618, %vm602
        %vm635 = vmand %vm619, %vm603
        %vm636 = vmand %vm620, %vm604
        %vm637 = vmand %vm621, %vm605
        %vm638 = vmand %vm622, %vm606
        %v639 = vadd.s32 %v485, 32
        %v640 = vadd.s32 %v492, 32
        %v641 = vadd.s32 %v499, 32
        %v642 = vadd.s32 %v506, 32
        %v643 = vadd.s32 %v513, 32
        %v644 = vadd.s32 %v520, 32
        %v645 = vadd.s32 %v527, 32
        %v646 = vadd.s32 %v534, 32
        %v647 = vadd.s32 %v541, 32
        %v648 = vadd.s32 %v548, 32
        %v649 = vadd.s32 %v555, 32
        %v650 = vadd.s32 %v562, 32
        %v651 = vadd.s32 %v569, 32
        %v652 = vadd.s32 %v576, 32
        %v653 = vadd.s32 %v583, 32
        %v654 = vadd.s32 %v590, 32
        %v655 = vsel %vm623, %v639, %v485
        %v656 = vsel %vm624, %v640, %v492
        %v657 = vsel %vm625, %v641, %v499
        %v658 = vsel %vm626, %v642, %v506
        %v659 = vsel %vm627, %v643, %v513
        %v660 = vsel %vm628, %v644, %v520
        %v661 = vsel %vm629, %v645, %v527
        %v662 = vsel %vm630, %v646, %v534
        %v663 = vsel %vm631, %v647, %v541
        %v664 = vsel %vm632, %v648, %v548
        %v665 = vsel %vm633, %v649, %v555
        %v666 = vsel %vm634, %v650, %v562
        %v667 = vsel %vm635, %v651, %v569
        %v668 = vsel %vm636, %v652, %v576
        %v669 = vsel %vm637, %v653, %v583
        %v670 = vsel %vm638, %v654, %v590
        %v671 = vpack.c.bf16 %v447, %v446
        %v672 = vpack.c.bf16 %v449, %v448
        %v673 = vpack.c.bf16 %v451, %v450
        %v674 = vpack.c.bf16 %v453, %v452
        %v675 = vpack.c.bf16 %v455, %v454
        %v676 = vpack.c.bf16 %v457, %v456
        %v677 = vpack.c.bf16 %v459, %v458
        %v678 = vpack.c.bf16 %v461, %v460
        %v679 = vld [vmem:[%s1] sm:$0x3]
        %vm680 = vcmask 31744
        %v682 = vsel %vm680, %v671, 0
        %v685 = vsel %vm680, %v672, 0
        %v688 = vsel %vm680, %v673, 0
        %v691 = vsel %vm680, %v674, 0
        %v694 = vsel %vm680, %v675, 0
        %v697 = vsel %vm680, %v676, 0
        %v700 = vsel %vm680, %v677, 0
        %v703 = vsel %vm680, %v678, 0
        %vm705 = vcmask 1041408
        %v707 = vsel %vm705, %v679, 0
        %709 = vmatprep.subr.bf16.mxu0 0
        %710 = vmatpush1.bf16.msra.mxu0 0
        %711 = vmatprep.subr.bf16.mxu0 0
        %712 = vmatpush1.bf16.msra.mxu0 0
        %713 = vmatprep.subr.bf16.mxu0 0
        %714 = vmatpush1.bf16.msra.mxu0 0
        %715 = vmatprep.subr.bf16.mxu0 0
        %716 = vmatpush1.bf16.msra.mxu0 0
        %717 = vmatprep.subr.bf16.mxu0 0
        %718 = vmatpush1.bf16.msra.mxu0 0
        %719 = vmatprep.subr.bf16.mxu0 0
        %720 = vmatpush1.bf16.msra.mxu0 0
        %721 = vmatprep.subr.bf16.mxu0 0
        %722 = vmatpush1.bf16.msra.mxu0 0
        %723 = vmatprep.subr.bf16.mxu0 0
        %724 = vmatpush1.bf16.msra.mxu0 %v707
        %725 = vmatprep.subr.bf16.mxu0 0
        %726 = vmatpush2.bf16.msra.mxu0 0
        %727 = vmatprep.subr.bf16.mxu0 0
        %728 = vmatpush2.bf16.msra.mxu0 0
        %729 = vmatprep.subr.bf16.mxu0 0
        %730 = vmatpush2.bf16.msra.mxu0 0
        %731 = vmatprep.subr.bf16.mxu0 0
        %732 = vmatpush2.bf16.msra.mxu0 0
        %733 = vmatprep.subr.bf16.mxu0 0
        %734 = vmatpush2.bf16.msra.mxu0 0
        %735 = vmatprep.subr.bf16.mxu0 0
        %736 = vmatpush2.bf16.msra.mxu0 0
        %737 = vmatprep.subr.bf16.mxu0 0
        %738 = vmatpush2.bf16.msra.mxu0 0
        %739 = vmatprep.subr.bf16.mxu0 0
        %740 = vmatpush2.bf16.msra.mxu0 0
        %741 = vmatprep.mubr.bf16.mxu0 0
        %742 = vmatmul.mubr.bf16.gmra.mxu0 %v682
        %v743 = vpop.f32.mrf.mxu0
        %v744 = vadd.f32 0.0, %v743
        %v745 = vpop.f32.mrf.mxu0
        %v746 = vpop.f32.mrf.mxu0
        %v747 = vadd.f32 0.0, %v746
        %v748 = vpop.f32.mrf.mxu0
        %749 = vmatprep.mubr.bf16.mxu0 0
        %750 = vmatmul.mubr.bf16.gmra.mxu0 %v685
        %v751 = vpop.f32.mrf.mxu0
        %v752 = vadd.f32 0.0, %v751
        %v753 = vpop.f32.mrf.mxu0
        %v754 = vpop.f32.mrf.mxu0
        %v755 = vadd.f32 0.0, %v754
        %v756 = vpop.f32.mrf.mxu0
        %757 = vmatprep.mubr.bf16.mxu0 0
        %758 = vmatmul.mubr.bf16.gmra.mxu0 %v688
        %v759 = vpop.f32.mrf.mxu0
        %v760 = vadd.f32 0.0, %v759
        %v761 = vpop.f32.mrf.mxu0
        %v762 = vpop.f32.mrf.mxu0
        %v763 = vadd.f32 0.0, %v762
        %v764 = vpop.f32.mrf.mxu0
        %765 = vmatprep.mubr.bf16.mxu0 0
        %766 = vmatmul.mubr.bf16.gmra.mxu0 %v691
        %v767 = vpop.f32.mrf.mxu0
        %v768 = vadd.f32 0.0, %v767
        %v769 = vpop.f32.mrf.mxu0
        %v770 = vpop.f32.mrf.mxu0
        %v771 = vadd.f32 0.0, %v770
        %v772 = vpop.f32.mrf.mxu0
        %773 = vmatprep.mubr.bf16.mxu0 0
        %774 = vmatmul.mubr.bf16.gmra.mxu0 %v694
        %v775 = vpop.f32.mrf.mxu0
        %v776 = vadd.f32 0.0, %v775
        %v777 = vpop.f32.mrf.mxu0
        %v778 = vpop.f32.mrf.mxu0
        %v779 = vadd.f32 0.0, %v778
        %v780 = vpop.f32.mrf.mxu0
        %781 = vmatprep.mubr.bf16.mxu0 0
        %782 = vmatmul.mubr.bf16.gmra.mxu0 %v697
        %v783 = vpop.f32.mrf.mxu0
        %v784 = vadd.f32 0.0, %v783
        %v785 = vpop.f32.mrf.mxu0
        %v786 = vpop.f32.mrf.mxu0
        %v787 = vadd.f32 0.0, %v786
        %v788 = vpop.f32.mrf.mxu0
        %789 = vmatprep.mubr.bf16.mxu0 0
        %790 = vmatmul.mubr.bf16.gmra.mxu0 %v700
        %v791 = vpop.f32.mrf.mxu0
        %v792 = vadd.f32 0.0, %v791
        %v793 = vpop.f32.mrf.mxu0
        %v794 = vpop.f32.mrf.mxu0
        %v795 = vadd.f32 0.0, %v794
        %v796 = vpop.f32.mrf.mxu0
        %797 = vmatprep.mubr.bf16.mxu0 0
        %798 = vmatmul.mubr.bf16.gmra.mxu0 %v703
        %v799 = vpop.f32.mrf.mxu0
        %v800 = vadd.f32 0.0, %v799
        %v801 = vpop.f32.mrf.mxu0
        %v802 = vpop.f32.mrf.mxu0
        %v803 = vadd.f32 0.0, %v802
        %v804 = vpop.f32.mrf.mxu0
        %805 = vdwg.mxu0
        %vm806 = vcmp.ge.s32.totalorder %v655, 1
        %vm807 = vcmp.ge.s32.totalorder %v656, 1
        %vm808 = vcmp.ge.s32.totalorder %v657, 1
        %vm809 = vcmp.ge.s32.totalorder %v658, 1
        %vm810 = vcmp.ge.s32.totalorder %v659, 1
        %vm811 = vcmp.ge.s32.totalorder %v660, 1
        %vm812 = vcmp.ge.s32.totalorder %v661, 1
        %vm813 = vcmp.ge.s32.totalorder %v662, 1
        %vm814 = vcmp.ge.s32.totalorder %v663, 1
        %vm815 = vcmp.ge.s32.totalorder %v664, 1
        %vm816 = vcmp.ge.s32.totalorder %v665, 1
        %vm817 = vcmp.ge.s32.totalorder %v666, 1
        %vm818 = vcmp.ge.s32.totalorder %v667, 1
        %vm819 = vcmp.ge.s32.totalorder %v668, 1
        %vm820 = vcmp.ge.s32.totalorder %v669, 1
        %vm821 = vcmp.ge.s32.totalorder %v670, 1
        %v822 = vsel %vm806, 1, 0
        %v823 = vsel %vm807, 1, 0
        %v824 = vsel %vm808, 1, 0
        %v825 = vsel %vm809, 1, 0
        %v826 = vsel %vm810, 1, 0
        %v827 = vsel %vm811, 1, 0
        %v828 = vsel %vm812, 1, 0
        %v829 = vsel %vm813, 1, 0
        %v830 = vsel %vm814, 1, 0
        %v831 = vsel %vm815, 1, 0
        %v832 = vsel %vm816, 1, 0
        %v833 = vsel %vm817, 1, 0
        %v834 = vsel %vm818, 1, 0
        %v835 = vsel %vm819, 1, 0
        %v836 = vsel %vm820, 1, 0
        %v837 = vsel %vm821, 1, 0
        %v838 = vcvt.s32.f32 %v822
        %v839 = vcvt.s32.f32 %v823
        %v840 = vcvt.s32.f32 %v824
        %v841 = vcvt.s32.f32 %v825
        %v842 = vcvt.s32.f32 %v826
        %v843 = vcvt.s32.f32 %v827
        %v844 = vcvt.s32.f32 %v828
        %v845 = vcvt.s32.f32 %v829
        %v846 = vcvt.s32.f32 %v830
        %v847 = vcvt.s32.f32 %v831
        %v848 = vcvt.s32.f32 %v832
        %v849 = vcvt.s32.f32 %v833
        %v850 = vcvt.s32.f32 %v834
        %v851 = vcvt.s32.f32 %v835
        %v852 = vcvt.s32.f32 %v836
        %v853 = vcvt.s32.f32 %v837
        %v854 = vrot.slane %v744, 7
        %v855 = vrot.slane %v747, 7
        %v856 = vrot.slane %v752, 7
        %v857 = vrot.slane %v755, 7
        %v858 = vrot.slane %v760, 7
        %v859 = vrot.slane %v763, 7
        %v860 = vrot.slane %v768, 7
        %v861 = vrot.slane %v771, 7
        %v862 = vrot.slane %v776, 7
        %v863 = vrot.slane %v779, 7
        %v864 = vrot.slane %v784, 7
        %v865 = vrot.slane %v787, 7
        %v866 = vrot.slane %v792, 7
        %v867 = vrot.slane %v795, 7
        %v868 = vrot.slane %v800, 7
        %v869 = vrot.slane %v803, 7
        %vm870 = vcmp.lt.s32.totalorder %v463, 1
        %v871 = vsel %vm870, %v868, %v869
        %v872 = vsel %vm870, %v867, %v868
        %v873 = vsel %vm870, %v866, %v867
        %v874 = vsel %vm870, %v865, %v866
        %v875 = vsel %vm870, %v864, %v865
        %v876 = vsel %vm870, %v863, %v864
        %v877 = vsel %vm870, %v862, %v863
        %v878 = vsel %vm870, %v861, %v862
        %v879 = vsel %vm870, %v860, %v861
        %v880 = vsel %vm870, %v859, %v860
        %v881 = vsel %vm870, %v858, %v859
        %v882 = vsel %vm870, %v857, %v858
        %v883 = vsel %vm870, %v856, %v857
        %v884 = vsel %vm870, %v855, %v856
        %v885 = vsel %vm870, %v854, %v855
        %v886 = vsel %vm870, %v869, %v854
        %v887 = vmul.f32 %v886, %v838
        %v888 = vmul.f32 %v885, %v839
        %v889 = vmul.f32 %v884, %v840
        %v890 = vmul.f32 %v883, %v841
        %v891 = vmul.f32 %v882, %v842
        %v892 = vmul.f32 %v881, %v843
        %v893 = vmul.f32 %v880, %v844
        %v894 = vmul.f32 %v879, %v845
        %v895 = vmul.f32 %v878, %v846
        %v896 = vmul.f32 %v877, %v847
        %v897 = vmul.f32 %v876, %v848
        %v898 = vmul.f32 %v875, %v849
        %v899 = vmul.f32 %v874, %v850
        %v900 = vmul.f32 %v873, %v851
        %v901 = vmul.f32 %v872, %v852
        %v902 = vmul.f32 %v871, %v853
        %s903 = scalar_lea.vmem %s1, 2
        %v904 = vld [vmem:[%s903] sm:$0x3]
        %v906 = vsel %vm705, %v904, 0
        %908 = vmatprep.subr.bf16.mxu0 0
        %909 = vmatpush1.bf16.msra.mxu0 0
        %910 = vmatprep.subr.bf16.mxu0 0
        %911 = vmatpush1.bf16.msra.mxu0 0
        %912 = vmatprep.subr.bf16.mxu0 0
        %913 = vmatpush1.bf16.msra.mxu0 0
        %914 = vmatprep.subr.bf16.mxu0 0
        %915 = vmatpush1.bf16.msra.mxu0 0
        %916 = vmatprep.subr.bf16.mxu0 0
        %917 = vmatpush1.bf16.msra.mxu0 0
        %918 = vmatprep.subr.bf16.mxu0 0
        %919 = vmatpush1.bf16.msra.mxu0 0
        %920 = vmatprep.subr.bf16.mxu0 0
        %921 = vmatpush1.bf16.msra.mxu0 0
        %922 = vmatprep.subr.bf16.mxu0 0
        %923 = vmatpush1.bf16.msra.mxu0 %v906
        %924 = vmatprep.subr.bf16.mxu0 0
        %925 = vmatpush2.bf16.msra.mxu0 0
        %926 = vmatprep.subr.bf16.mxu0 0
        %927 = vmatpush2.bf16.msra.mxu0 0
        %928 = vmatprep.subr.bf16.mxu0 0
        %929 = vmatpush2.bf16.msra.mxu0 0
        %930 = vmatprep.subr.bf16.mxu0 0
        %931 = vmatpush2.bf16.msra.mxu0 0
        %932 = vmatprep.subr.bf16.mxu0 0
        %933 = vmatpush2.bf16.msra.mxu0 0
        %934 = vmatprep.subr.bf16.mxu0 0
        %935 = vmatpush2.bf16.msra.mxu0 0
        %936 = vmatprep.subr.bf16.mxu0 0
        %937 = vmatpush2.bf16.msra.mxu0 0
        %938 = vmatprep.subr.bf16.mxu0 0
        %939 = vmatpush2.bf16.msra.mxu0 0
        %940 = vmatprep.mubr.bf16.mxu0 0
        %941 = vmatmul.mubr.bf16.gmra.mxu0 %v682
        %v942 = vpop.f32.mrf.mxu0
        %v943 = vadd.f32 0.0, %v942
        %v944 = vpop.f32.mrf.mxu0
        %v945 = vpop.f32.mrf.mxu0
        %v946 = vadd.f32 0.0, %v945
        %v947 = vpop.f32.mrf.mxu0
        %948 = vmatprep.mubr.bf16.mxu0 0
        %949 = vmatmul.mubr.bf16.gmra.mxu0 %v685
        %v950 = vpop.f32.mrf.mxu0
        %v951 = vadd.f32 0.0, %v950
        %v952 = vpop.f32.mrf.mxu0
        %v953 = vpop.f32.mrf.mxu0
        %v954 = vadd.f32 0.0, %v953
        %v955 = vpop.f32.mrf.mxu0
        %956 = vmatprep.mubr.bf16.mxu0 0
        %957 = vmatmul.mubr.bf16.gmra.mxu0 %v688
        %v958 = vpop.f32.mrf.mxu0
        %v959 = vadd.f32 0.0, %v958
        %v960 = vpop.f32.mrf.mxu0
        %v961 = vpop.f32.mrf.mxu0
        %v962 = vadd.f32 0.0, %v961
        %v963 = vpop.f32.mrf.mxu0
        %964 = vmatprep.mubr.bf16.mxu0 0
        %965 = vmatmul.mubr.bf16.gmra.mxu0 %v691
        %v966 = vpop.f32.mrf.mxu0
        %v967 = vadd.f32 0.0, %v966
        %v968 = vpop.f32.mrf.mxu0
        %v969 = vpop.f32.mrf.mxu0
        %v970 = vadd.f32 0.0, %v969
        %v971 = vpop.f32.mrf.mxu0
        %972 = vmatprep.mubr.bf16.mxu0 0
        %973 = vmatmul.mubr.bf16.gmra.mxu0 %v694
        %v974 = vpop.f32.mrf.mxu0
        %v975 = vadd.f32 0.0, %v974
        %v976 = vpop.f32.mrf.mxu0
        %v977 = vpop.f32.mrf.mxu0
        %v978 = vadd.f32 0.0, %v977
        %v979 = vpop.f32.mrf.mxu0
        %980 = vmatprep.mubr.bf16.mxu0 0
        %981 = vmatmul.mubr.bf16.gmra.mxu0 %v697
        %v982 = vpop.f32.mrf.mxu0
        %v983 = vadd.f32 0.0, %v982
        %v984 = vpop.f32.mrf.mxu0
        %v985 = vpop.f32.mrf.mxu0
        %v986 = vadd.f32 0.0, %v985
        %v987 = vpop.f32.mrf.mxu0
        %988 = vmatprep.mubr.bf16.mxu0 0
        %989 = vmatmul.mubr.bf16.gmra.mxu0 %v700
        %v990 = vpop.f32.mrf.mxu0
        %v991 = vadd.f32 0.0, %v990
        %v992 = vpop.f32.mrf.mxu0
        %v993 = vpop.f32.mrf.mxu0
        %v994 = vadd.f32 0.0, %v993
        %v995 = vpop.f32.mrf.mxu0
        %996 = vmatprep.mubr.bf16.mxu0 0
        %997 = vmatmul.mubr.bf16.gmra.mxu0 %v703
        %v998 = vpop.f32.mrf.mxu0
        %v999 = vadd.f32 0.0, %v998
        %v1000 = vpop.f32.mrf.mxu0
        %v1001 = vpop.f32.mrf.mxu0
        %v1002 = vadd.f32 0.0, %v1001
        %v1003 = vpop.f32.mrf.mxu0
        %1004 = vdwg.mxu0
        %v1005 = vadd.f32 %v887, %v943
        %v1006 = vadd.f32 %v888, %v946
        %v1007 = vadd.f32 %v889, %v951
        %v1008 = vadd.f32 %v890, %v954
        %v1009 = vadd.f32 %v891, %v959
        %v1010 = vadd.f32 %v892, %v962
        %v1011 = vadd.f32 %v893, %v967
        %v1012 = vadd.f32 %v894, %v970
        %v1013 = vadd.f32 %v895, %v975
        %v1014 = vadd.f32 %v896, %v978
        %v1015 = vadd.f32 %v897, %v983
        %v1016 = vadd.f32 %v898, %v986
        %v1017 = vadd.f32 %v899, %v991
        %v1018 = vadd.f32 %v900, %v994
        %v1019 = vadd.f32 %v901, %v999
        %v1020 = vadd.f32 %v902, %v1002
        %v1021 = vld [vmem:[%s2] sm:$0x1]
        %v1023 = vlaneseq
        %v1024 = vshrl.u32 %v1023, 7
        %v1025 = vsub.s32 0, %v1024
        %v1026 = vrot.slane %v1021, %v1025
        %v1028 = vadd.f32 %v1005, %v1026
        %v1029 = vadd.f32 %v1006, %v1026
        %v1030 = vadd.f32 %v1007, %v1026
        %v1031 = vadd.f32 %v1008, %v1026
        %v1032 = vadd.f32 %v1009, %v1026
        %v1033 = vadd.f32 %v1010, %v1026
        %v1034 = vadd.f32 %v1011, %v1026
        %v1035 = vadd.f32 %v1012, %v1026
        %v1036 = vadd.f32 %v1013, %v1026
        %v1037 = vadd.f32 %v1014, %v1026
        %v1038 = vadd.f32 %v1015, %v1026
        %v1039 = vadd.f32 %v1016, %v1026
        %v1040 = vadd.f32 %v1017, %v1026
        %v1041 = vadd.f32 %v1018, %v1026
        %v1042 = vadd.f32 %v1019, %v1026
        %v1043 = vadd.f32 %v1020, %v1026
        %v1044 = vmax.f32 %v1028, 0.0
        %v1045 = vmax.f32 %v1029, 0.0
        %v1046 = vmax.f32 %v1030, 0.0
        %v1047 = vmax.f32 %v1031, 0.0
        %v1048 = vmax.f32 %v1032, 0.0
        %v1049 = vmax.f32 %v1033, 0.0
        %v1050 = vmax.f32 %v1034, 0.0
        %v1051 = vmax.f32 %v1035, 0.0
        %v1052 = vmax.f32 %v1036, 0.0
        %v1053 = vmax.f32 %v1037, 0.0
        %v1054 = vmax.f32 %v1038, 0.0
        %v1055 = vmax.f32 %v1039, 0.0
        %v1056 = vmax.f32 %v1040, 0.0
        %v1057 = vmax.f32 %v1041, 0.0
        %v1058 = vmax.f32 %v1042, 0.0
        %v1059 = vmax.f32 %v1043, 0.0
        %v1060 = vpack.c.bf16 %v1045, %v1044
        %v1061 = vpack.c.bf16 %v1047, %v1046
        %v1062 = vpack.c.bf16 %v1049, %v1048
        %v1063 = vpack.c.bf16 %v1051, %v1050
        %v1064 = vpack.c.bf16 %v1053, %v1052
        %v1065 = vpack.c.bf16 %v1055, %v1054
        %v1066 = vpack.c.bf16 %v1057, %v1056
        %v1067 = vpack.c.bf16 %v1059, %v1058
        %v1068 = vld [vmem:[%s3] sm:$0xf]
        %v1069 = vld [vmem:[%s3 + $0x4] sm:$0xf]
        %v1070 = vld [vmem:[%s3 + $0x8] sm:$0xf]
        %v1071 = vld [vmem:[%s3 + $0xc] sm:$0xf]
        %v1076 = vunpack.c.l.b16 %v1068
        %v1077 = vunpack.c.l.b16 %v1069
        %v1078 = vunpack.c.l.b16 %v1070
        %v1079 = vunpack.c.l.b16 %v1071
        %v1080 = vpack.c.b16 %v1077, %v1076
        %v1081 = vpack.c.b16 %v1079, %v1078
        %vm1084 = vcmask 261120
        %v1086 = vsel %vm1084, %v1060, 0
        %v1089 = vsel %vm1084, %v1061, 0
        %v1092 = vsel %vm1084, %v1062, 0
        %v1095 = vsel %vm1084, %v1063, 0
        %v1098 = vsel %vm1084, %v1064, 0
        %v1101 = vsel %vm1084, %v1065, 0
        %v1104 = vsel %vm1084, %v1066, 0
        %v1107 = vsel %vm1084, %v1067, 0
        %1109 = vmatprep.subr.bf16.mxu0 0
        %1110 = vmatpush1.bf16.msra.mxu0 0
        %1111 = vmatprep.subr.bf16.mxu0 0
        %1112 = vmatpush1.bf16.msra.mxu0 0
        %1113 = vmatprep.subr.bf16.mxu0 0
        %1114 = vmatpush1.bf16.msra.mxu0 0
        %1115 = vmatprep.subr.bf16.mxu0 0
        %1116 = vmatpush1.bf16.msra.mxu0 0
        %1117 = vmatprep.subr.bf16.mxu0 0
        %1118 = vmatpush1.bf16.msra.mxu0 0
        %1119 = vmatprep.subr.bf16.mxu0 0
        %1120 = vmatpush1.bf16.msra.mxu0 0
        %1121 = vmatprep.subr.bf16.mxu0 0
        %1122 = vmatpush1.bf16.msra.mxu0 %v1081
        %1123 = vmatprep.subr.bf16.mxu0 0
        %1124 = vmatpush1.bf16.msra.mxu0 %v1080
        %1125 = vmatprep.subr.bf16.mxu0 0
        %1126 = vmatpush2.bf16.msra.mxu0 0
        %1127 = vmatprep.subr.bf16.mxu0 0
        %1128 = vmatpush2.bf16.msra.mxu0 0
        %1129 = vmatprep.subr.bf16.mxu0 0
        %1130 = vmatpush2.bf16.msra.mxu0 0
        %1131 = vmatprep.subr.bf16.mxu0 0
        %1132 = vmatpush2.bf16.msra.mxu0 0
        %1133 = vmatprep.subr.bf16.mxu0 0
        %1134 = vmatpush2.bf16.msra.mxu0 0
        %1135 = vmatprep.subr.bf16.mxu0 0
        %1136 = vmatpush2.bf16.msra.mxu0 0
        %1137 = vmatprep.subr.bf16.mxu0 0
        %1138 = vmatpush2.bf16.msra.mxu0 0
        %1139 = vmatprep.subr.bf16.mxu0 0
        %1140 = vmatpush2.bf16.msra.mxu0 0
        %1141 = vmatprep.mubr.bf16.mxu0 0
        %1142 = vmatmul.mubr.bf16.gmra.mxu0 %v1086
        %v1143 = vpop.f32.mrf.mxu0
        %v1144 = vadd.f32 0.0, %v1143
        %v1145 = vpop.f32.mrf.mxu0
        %v1146 = vpop.f32.mrf.mxu0
        %v1147 = vadd.f32 0.0, %v1146
        %v1148 = vpop.f32.mrf.mxu0
        %1149 = vmatprep.mubr.bf16.mxu0 0
        %1150 = vmatmul.mubr.bf16.gmra.mxu0 %v1089
        %v1151 = vpop.f32.mrf.mxu0
        %v1152 = vadd.f32 0.0, %v1151
        %v1153 = vpop.f32.mrf.mxu0
        %v1154 = vpop.f32.mrf.mxu0
        %v1155 = vadd.f32 0.0, %v1154
        %v1156 = vpop.f32.mrf.mxu0
        %1157 = vmatprep.mubr.bf16.mxu0 0
        %1158 = vmatmul.mubr.bf16.gmra.mxu0 %v1092
        %v1159 = vpop.f32.mrf.mxu0
        %v1160 = vadd.f32 0.0, %v1159
        %v1161 = vpop.f32.mrf.mxu0
        %v1162 = vpop.f32.mrf.mxu0
        %v1163 = vadd.f32 0.0, %v1162
        %v1164 = vpop.f32.mrf.mxu0
        %1165 = vmatprep.mubr.bf16.mxu0 0
        %1166 = vmatmul.mubr.bf16.gmra.mxu0 %v1095
        %v1167 = vpop.f32.mrf.mxu0
        %v1168 = vadd.f32 0.0, %v1167
        %v1169 = vpop.f32.mrf.mxu0
        %v1170 = vpop.f32.mrf.mxu0
        %v1171 = vadd.f32 0.0, %v1170
        %v1172 = vpop.f32.mrf.mxu0
        %1173 = vmatprep.mubr.bf16.mxu0 0
        %1174 = vmatmul.mubr.bf16.gmra.mxu0 %v1098
        %v1175 = vpop.f32.mrf.mxu0
        %v1176 = vadd.f32 0.0, %v1175
        %v1177 = vpop.f32.mrf.mxu0
        %v1178 = vpop.f32.mrf.mxu0
        %v1179 = vadd.f32 0.0, %v1178
        %v1180 = vpop.f32.mrf.mxu0
        %1181 = vmatprep.mubr.bf16.mxu0 0
        %1182 = vmatmul.mubr.bf16.gmra.mxu0 %v1101
        %v1183 = vpop.f32.mrf.mxu0
        %v1184 = vadd.f32 0.0, %v1183
        %v1185 = vpop.f32.mrf.mxu0
        %v1186 = vpop.f32.mrf.mxu0
        %v1187 = vadd.f32 0.0, %v1186
        %v1188 = vpop.f32.mrf.mxu0
        %1189 = vmatprep.mubr.bf16.mxu0 0
        %1190 = vmatmul.mubr.bf16.gmra.mxu0 %v1104
        %v1191 = vpop.f32.mrf.mxu0
        %v1192 = vadd.f32 0.0, %v1191
        %v1193 = vpop.f32.mrf.mxu0
        %v1194 = vpop.f32.mrf.mxu0
        %v1195 = vadd.f32 0.0, %v1194
        %v1196 = vpop.f32.mrf.mxu0
        %1197 = vmatprep.mubr.bf16.mxu0 0
        %1198 = vmatmul.mubr.bf16.gmra.mxu0 %v1107
        %v1199 = vpop.f32.mrf.mxu0
        %v1200 = vadd.f32 0.0, %v1199
        %v1201 = vpop.f32.mrf.mxu0
        %v1202 = vpop.f32.mrf.mxu0
        %v1203 = vadd.f32 0.0, %v1202
        %v1204 = vpop.f32.mrf.mxu0
        %1205 = vdwg.mxu0
        %v1206 = vrot.slane %v1144, 7
        %v1207 = vrot.slane %v1147, 7
        %v1208 = vrot.slane %v1152, 7
        %v1209 = vrot.slane %v1155, 7
        %v1210 = vrot.slane %v1160, 7
        %v1211 = vrot.slane %v1163, 7
        %v1212 = vrot.slane %v1168, 7
        %v1213 = vrot.slane %v1171, 7
        %v1214 = vrot.slane %v1176, 7
        %v1215 = vrot.slane %v1179, 7
        %v1216 = vrot.slane %v1184, 7
        %v1217 = vrot.slane %v1187, 7
        %v1218 = vrot.slane %v1192, 7
        %v1219 = vrot.slane %v1195, 7
        %v1220 = vrot.slane %v1200, 7
        %v1221 = vrot.slane %v1203, 7
        %v1222 = vsel %vm870, %v1220, %v1221
        %v1223 = vsel %vm870, %v1219, %v1220
        %v1224 = vsel %vm870, %v1218, %v1219
        %v1225 = vsel %vm870, %v1217, %v1218
        %v1226 = vsel %vm870, %v1216, %v1217
        %v1227 = vsel %vm870, %v1215, %v1216
        %v1228 = vsel %vm870, %v1214, %v1215
        %v1229 = vsel %vm870, %v1213, %v1214
        %v1230 = vsel %vm870, %v1212, %v1213
        %v1231 = vsel %vm870, %v1211, %v1212
        %v1232 = vsel %vm870, %v1210, %v1211
        %v1233 = vsel %vm870, %v1209, %v1210
        %v1234 = vsel %vm870, %v1208, %v1209
        %v1235 = vsel %vm870, %v1207, %v1208
        %v1236 = vsel %vm870, %v1206, %v1207
        %v1237 = vsel %vm870, %v1221, %v1206
        %v1238 = vmul.f32 %v1237, %v838
        %v1239 = vmul.f32 %v1236, %v839
        %v1240 = vmul.f32 %v1235, %v840
        %v1241 = vmul.f32 %v1234, %v841
        %v1242 = vmul.f32 %v1233, %v842
        %v1243 = vmul.f32 %v1232, %v843
        %v1244 = vmul.f32 %v1231, %v844
        %v1245 = vmul.f32 %v1230, %v845
        %v1246 = vmul.f32 %v1229, %v846
        %v1247 = vmul.f32 %v1228, %v847
        %v1248 = vmul.f32 %v1227, %v848
        %v1249 = vmul.f32 %v1226, %v849
        %v1250 = vmul.f32 %v1225, %v850
        %v1251 = vmul.f32 %v1224, %v851
        %v1252 = vmul.f32 %v1223, %v852
        %v1253 = vmul.f32 %v1222, %v853
        %s1254 = scalar_lea.vmem %s3, 16
        %v1255 = vld [vmem:[%s1254] sm:$0xf]
        %v1256 = vld [vmem:[%s1254 + $0x4] sm:$0xf]
        %v1257 = vld [vmem:[%s1254 + $0x8] sm:$0xf]
        %v1258 = vld [vmem:[%s1254 + $0xc] sm:$0xf]
        %v1263 = vunpack.c.l.b16 %v1255
        %v1264 = vunpack.c.l.b16 %v1256
        %v1265 = vunpack.c.l.b16 %v1257
        %v1266 = vunpack.c.l.b16 %v1258
        %v1267 = vpack.c.b16 %v1264, %v1263
        %v1268 = vpack.c.b16 %v1266, %v1265
        %1271 = vmatprep.subr.bf16.mxu0 0
        %1272 = vmatpush1.bf16.msra.mxu0 0
        %1273 = vmatprep.subr.bf16.mxu0 0
        %1274 = vmatpush1.bf16.msra.mxu0 0
        %1275 = vmatprep.subr.bf16.mxu0 0
        %1276 = vmatpush1.bf16.msra.mxu0 0
        %1277 = vmatprep.subr.bf16.mxu0 0
        %1278 = vmatpush1.bf16.msra.mxu0 0
        %1279 = vmatprep.subr.bf16.mxu0 0
        %1280 = vmatpush1.bf16.msra.mxu0 0
        %1281 = vmatprep.subr.bf16.mxu0 0
        %1282 = vmatpush1.bf16.msra.mxu0 0
        %1283 = vmatprep.subr.bf16.mxu0 0
        %1284 = vmatpush1.bf16.msra.mxu0 %v1268
        %1285 = vmatprep.subr.bf16.mxu0 0
        %1286 = vmatpush1.bf16.msra.mxu0 %v1267
        %1287 = vmatprep.subr.bf16.mxu0 0
        %1288 = vmatpush2.bf16.msra.mxu0 0
        %1289 = vmatprep.subr.bf16.mxu0 0
        %1290 = vmatpush2.bf16.msra.mxu0 0
        %1291 = vmatprep.subr.bf16.mxu0 0
        %1292 = vmatpush2.bf16.msra.mxu0 0
        %1293 = vmatprep.subr.bf16.mxu0 0
        %1294 = vmatpush2.bf16.msra.mxu0 0
        %1295 = vmatprep.subr.bf16.mxu0 0
        %1296 = vmatpush2.bf16.msra.mxu0 0
        %1297 = vmatprep.subr.bf16.mxu0 0
        %1298 = vmatpush2.bf16.msra.mxu0 0
        %1299 = vmatprep.subr.bf16.mxu0 0
        %1300 = vmatpush2.bf16.msra.mxu0 0
        %1301 = vmatprep.subr.bf16.mxu0 0
        %1302 = vmatpush2.bf16.msra.mxu0 0
        %1303 = vmatprep.mubr.bf16.mxu0 0
        %1304 = vmatmul.mubr.bf16.gmra.mxu0 %v1086
        %v1305 = vpop.f32.mrf.mxu0
        %v1306 = vadd.f32 0.0, %v1305
        %v1307 = vpop.f32.mrf.mxu0
        %v1308 = vpop.f32.mrf.mxu0
        %v1309 = vadd.f32 0.0, %v1308
        %v1310 = vpop.f32.mrf.mxu0
        %1311 = vmatprep.mubr.bf16.mxu0 0
        %1312 = vmatmul.mubr.bf16.gmra.mxu0 %v1089
        %v1313 = vpop.f32.mrf.mxu0
        %v1314 = vadd.f32 0.0, %v1313
        %v1315 = vpop.f32.mrf.mxu0
        %v1316 = vpop.f32.mrf.mxu0
        %v1317 = vadd.f32 0.0, %v1316
        %v1318 = vpop.f32.mrf.mxu0
        %1319 = vmatprep.mubr.bf16.mxu0 0
        %1320 = vmatmul.mubr.bf16.gmra.mxu0 %v1092
        %v1321 = vpop.f32.mrf.mxu0
        %v1322 = vadd.f32 0.0, %v1321
        %v1323 = vpop.f32.mrf.mxu0
        %v1324 = vpop.f32.mrf.mxu0
        %v1325 = vadd.f32 0.0, %v1324
        %v1326 = vpop.f32.mrf.mxu0
        %1327 = vmatprep.mubr.bf16.mxu0 0
        %1328 = vmatmul.mubr.bf16.gmra.mxu0 %v1095
        %v1329 = vpop.f32.mrf.mxu0
        %v1330 = vadd.f32 0.0, %v1329
        %v1331 = vpop.f32.mrf.mxu0
        %v1332 = vpop.f32.mrf.mxu0
        %v1333 = vadd.f32 0.0, %v1332
        %v1334 = vpop.f32.mrf.mxu0
        %1335 = vmatprep.mubr.bf16.mxu0 0
        %1336 = vmatmul.mubr.bf16.gmra.mxu0 %v1098
        %v1337 = vpop.f32.mrf.mxu0
        %v1338 = vadd.f32 0.0, %v1337
        %v1339 = vpop.f32.mrf.mxu0
        %v1340 = vpop.f32.mrf.mxu0
        %v1341 = vadd.f32 0.0, %v1340
        %v1342 = vpop.f32.mrf.mxu0
        %1343 = vmatprep.mubr.bf16.mxu0 0
        %1344 = vmatmul.mubr.bf16.gmra.mxu0 %v1101
        %v1345 = vpop.f32.mrf.mxu0
        %v1346 = vadd.f32 0.0, %v1345
        %v1347 = vpop.f32.mrf.mxu0
        %v1348 = vpop.f32.mrf.mxu0
        %v1349 = vadd.f32 0.0, %v1348
        %v1350 = vpop.f32.mrf.mxu0
        %1351 = vmatprep.mubr.bf16.mxu0 0
        %1352 = vmatmul.mubr.bf16.gmra.mxu0 %v1104
        %v1353 = vpop.f32.mrf.mxu0
        %v1354 = vadd.f32 0.0, %v1353
        %v1355 = vpop.f32.mrf.mxu0
        %v1356 = vpop.f32.mrf.mxu0
        %v1357 = vadd.f32 0.0, %v1356
        %v1358 = vpop.f32.mrf.mxu0
        %1359 = vmatprep.mubr.bf16.mxu0 0
        %1360 = vmatmul.mubr.bf16.gmra.mxu0 %v1107
        %v1361 = vpop.f32.mrf.mxu0
        %v1362 = vadd.f32 0.0, %v1361
        %v1363 = vpop.f32.mrf.mxu0
        %v1364 = vpop.f32.mrf.mxu0
        %v1365 = vadd.f32 0.0, %v1364
        %v1366 = vpop.f32.mrf.mxu0
        %1367 = vdwg.mxu0
        %v1368 = vadd.f32 %v1238, %v1306
        %v1369 = vadd.f32 %v1239, %v1309
        %v1370 = vadd.f32 %v1240, %v1314
        %v1371 = vadd.f32 %v1241, %v1317
        %v1372 = vadd.f32 %v1242, %v1322
        %v1373 = vadd.f32 %v1243, %v1325
        %v1374 = vadd.f32 %v1244, %v1330
        %v1375 = vadd.f32 %v1245, %v1333
        %v1376 = vadd.f32 %v1246, %v1338
        %v1377 = vadd.f32 %v1247, %v1341
        %v1378 = vadd.f32 %v1248, %v1346
        %v1379 = vadd.f32 %v1249, %v1349
        %v1380 = vadd.f32 %v1250, %v1354
        %v1381 = vadd.f32 %v1251, %v1357
        %v1382 = vadd.f32 %v1252, %v1362
        %v1383 = vadd.f32 %v1253, %v1365
        %v1384 = vld [vmem:[%s4] sm:$0x1]
        %v1386 = vlaneseq
        %v1387 = vshrl.u32 %v1386, 7
        %v1388 = vsub.s32 0, %v1387
        %v1389 = vrot.slane %v1384, %v1388
        %v1391 = vadd.f32 %v1368, %v1389
        %v1392 = vadd.f32 %v1369, %v1389
        %v1393 = vadd.f32 %v1370, %v1389
        %v1394 = vadd.f32 %v1371, %v1389
        %v1395 = vadd.f32 %v1372, %v1389
        %v1396 = vadd.f32 %v1373, %v1389
        %v1397 = vadd.f32 %v1374, %v1389
        %v1398 = vadd.f32 %v1375, %v1389
        %v1399 = vadd.f32 %v1376, %v1389
        %v1400 = vadd.f32 %v1377, %v1389
        %v1401 = vadd.f32 %v1378, %v1389
        %v1402 = vadd.f32 %v1379, %v1389
        %v1403 = vadd.f32 %v1380, %v1389
        %v1404 = vadd.f32 %v1381, %v1389
        %v1405 = vadd.f32 %v1382, %v1389
        %v1406 = vadd.f32 %v1383, %v1389
        %v1407 = vmax.f32 %v1391, 0.0
        %v1408 = vmax.f32 %v1392, 0.0
        %v1409 = vmax.f32 %v1393, 0.0
        %v1410 = vmax.f32 %v1394, 0.0
        %v1411 = vmax.f32 %v1395, 0.0
        %v1412 = vmax.f32 %v1396, 0.0
        %v1413 = vmax.f32 %v1397, 0.0
        %v1414 = vmax.f32 %v1398, 0.0
        %v1415 = vmax.f32 %v1399, 0.0
        %v1416 = vmax.f32 %v1400, 0.0
        %v1417 = vmax.f32 %v1401, 0.0
        %v1418 = vmax.f32 %v1402, 0.0
        %v1419 = vmax.f32 %v1403, 0.0
        %v1420 = vmax.f32 %v1404, 0.0
        %v1421 = vmax.f32 %v1405, 0.0
        %v1422 = vmax.f32 %v1406, 0.0
        %v1423 = vld [vmem:[%s5] sm:$0x3]
        %v1424 = vld [vmem:[%s6] sm:$0x1]
        %v1426 = vlaneseq
        %v1427 = vshrl.u32 %v1426, 7
        %v1428 = vsub.s32 0, %v1427
        %v1429 = vrot.slane %v1424, %v1428
        %v1432 = vsel %vm705, %v1423, 0
        %1434 = vmatprep.subr.bf16.mxu0 0
        %1435 = vmatpush1.bf16.msra.mxu0 0
        %1436 = vmatprep.subr.bf16.mxu0 0
        %1437 = vmatpush1.bf16.msra.mxu0 0
        %1438 = vmatprep.subr.bf16.mxu0 0
        %1439 = vmatpush1.bf16.msra.mxu0 0
        %1440 = vmatprep.subr.bf16.mxu0 0
        %1441 = vmatpush1.bf16.msra.mxu0 0
        %1442 = vmatprep.subr.bf16.mxu0 0
        %1443 = vmatpush1.bf16.msra.mxu0 0
        %1444 = vmatprep.subr.bf16.mxu0 0
        %1445 = vmatpush1.bf16.msra.mxu0 0
        %1446 = vmatprep.subr.bf16.mxu0 0
        %1447 = vmatpush1.bf16.msra.mxu0 0
        %1448 = vmatprep.subr.bf16.mxu0 0
        %1449 = vmatpush1.bf16.msra.mxu0 %v1432
        %1450 = vmatprep.subr.bf16.mxu0 0
        %1451 = vmatpush2.bf16.msra.mxu0 0
        %1452 = vmatprep.subr.bf16.mxu0 0
        %1453 = vmatpush2.bf16.msra.mxu0 0
        %1454 = vmatprep.subr.bf16.mxu0 0
        %1455 = vmatpush2.bf16.msra.mxu0 0
        %1456 = vmatprep.subr.bf16.mxu0 0
        %1457 = vmatpush2.bf16.msra.mxu0 0
        %1458 = vmatprep.subr.bf16.mxu0 0
        %1459 = vmatpush2.bf16.msra.mxu0 0
        %1460 = vmatprep.subr.bf16.mxu0 0
        %1461 = vmatpush2.bf16.msra.mxu0 0
        %1462 = vmatprep.subr.bf16.mxu0 0
        %1463 = vmatpush2.bf16.msra.mxu0 0
        %1464 = vmatprep.subr.bf16.mxu0 0
        %1465 = vmatpush2.bf16.msra.mxu0 0
        %1466 = vmatprep.mubr.bf16.mxu0 0
        %1467 = vmatmul.mubr.bf16.gmra.mxu0 %v682
        %v1468 = vpop.f32.mrf.mxu0
        %v1469 = vadd.f32 %v1429, %v1468
        %v1470 = vpop.f32.mrf.mxu0
        %v1471 = vpop.f32.mrf.mxu0
        %v1472 = vadd.f32 %v1429, %v1471
        %v1473 = vpop.f32.mrf.mxu0
        %1474 = vmatprep.mubr.bf16.mxu0 0
        %1475 = vmatmul.mubr.bf16.gmra.mxu0 %v685
        %v1476 = vpop.f32.mrf.mxu0
        %v1477 = vadd.f32 %v1429, %v1476
        %v1478 = vpop.f32.mrf.mxu0
        %v1479 = vpop.f32.mrf.mxu0
        %v1480 = vadd.f32 %v1429, %v1479
        %v1481 = vpop.f32.mrf.mxu0
        %1482 = vmatprep.mubr.bf16.mxu0 0
        %1483 = vmatmul.mubr.bf16.gmra.mxu0 %v688
        %v1484 = vpop.f32.mrf.mxu0
        %v1485 = vadd.f32 %v1429, %v1484
        %v1486 = vpop.f32.mrf.mxu0
        %v1487 = vpop.f32.mrf.mxu0
        %v1488 = vadd.f32 %v1429, %v1487
        %v1489 = vpop.f32.mrf.mxu0
        %1490 = vmatprep.mubr.bf16.mxu0 0
        %1491 = vmatmul.mubr.bf16.gmra.mxu0 %v691
        %v1492 = vpop.f32.mrf.mxu0
        %v1493 = vadd.f32 %v1429, %v1492
        %v1494 = vpop.f32.mrf.mxu0
        %v1495 = vpop.f32.mrf.mxu0
        %v1496 = vadd.f32 %v1429, %v1495
        %v1497 = vpop.f32.mrf.mxu0
        %1498 = vmatprep.mubr.bf16.mxu0 0
        %1499 = vmatmul.mubr.bf16.gmra.mxu0 %v694
        %v1500 = vpop.f32.mrf.mxu0
        %v1501 = vadd.f32 %v1429, %v1500
        %v1502 = vpop.f32.mrf.mxu0
        %v1503 = vpop.f32.mrf.mxu0
        %v1504 = vadd.f32 %v1429, %v1503
        %v1505 = vpop.f32.mrf.mxu0
        %1506 = vmatprep.mubr.bf16.mxu0 0
        %1507 = vmatmul.mubr.bf16.gmra.mxu0 %v697
        %v1508 = vpop.f32.mrf.mxu0
        %v1509 = vadd.f32 %v1429, %v1508
        %v1510 = vpop.f32.mrf.mxu0
        %v1511 = vpop.f32.mrf.mxu0
        %v1512 = vadd.f32 %v1429, %v1511
        %v1513 = vpop.f32.mrf.mxu0
        %1514 = vmatprep.mubr.bf16.mxu0 0
        %1515 = vmatmul.mubr.bf16.gmra.mxu0 %v700
        %v1516 = vpop.f32.mrf.mxu0
        %v1517 = vadd.f32 %v1429, %v1516
        %v1518 = vpop.f32.mrf.mxu0
        %v1519 = vpop.f32.mrf.mxu0
        %v1520 = vadd.f32 %v1429, %v1519
        %v1521 = vpop.f32.mrf.mxu0
        %1522 = vmatprep.mubr.bf16.mxu0 0
        %1523 = vmatmul.mubr.bf16.gmra.mxu0 %v703
        %v1524 = vpop.f32.mrf.mxu0
        %v1525 = vadd.f32 %v1429, %v1524
        %v1526 = vpop.f32.mrf.mxu0
        %v1527 = vpop.f32.mrf.mxu0
        %v1528 = vadd.f32 %v1429, %v1527
        %v1529 = vpop.f32.mrf.mxu0
        %1530 = vdwg.mxu0
        %v1531 = vadd.f32 %v1407, %v1469
        %v1532 = vadd.f32 %v1408, %v1472
        %v1533 = vadd.f32 %v1409, %v1477
        %v1534 = vadd.f32 %v1410, %v1480
        %v1535 = vadd.f32 %v1411, %v1485
        %v1536 = vadd.f32 %v1412, %v1488
        %v1537 = vadd.f32 %v1413, %v1493
        %v1538 = vadd.f32 %v1414, %v1496
        %v1539 = vadd.f32 %v1415, %v1501
        %v1540 = vadd.f32 %v1416, %v1504
        %v1541 = vadd.f32 %v1417, %v1509
        %v1542 = vadd.f32 %v1418, %v1512
        %v1543 = vadd.f32 %v1419, %v1517
        %v1544 = vadd.f32 %v1420, %v1520
        %v1545 = vadd.f32 %v1421, %v1525
        %v1546 = vadd.f32 %v1422, %v1528
        %v1547 = vmax.f32 %v1531, 0.0
        %v1548 = vmax.f32 %v1532, 0.0
        %v1549 = vmax.f32 %v1533, 0.0
        %v1550 = vmax.f32 %v1534, 0.0
        %v1551 = vmax.f32 %v1535, 0.0
        %v1552 = vmax.f32 %v1536, 0.0
        %v1553 = vmax.f32 %v1537, 0.0
        %v1554 = vmax.f32 %v1538, 0.0
        %v1555 = vmax.f32 %v1539, 0.0
        %v1556 = vmax.f32 %v1540, 0.0
        %v1557 = vmax.f32 %v1541, 0.0
        %v1558 = vmax.f32 %v1542, 0.0
        %v1559 = vmax.f32 %v1543, 0.0
        %v1560 = vmax.f32 %v1544, 0.0
        %v1561 = vmax.f32 %v1545, 0.0
        %v1562 = vmax.f32 %v1546, 0.0
        %v1563 = vpack.c.bf16 %v1548, %v1547
        %v1564 = vpack.c.bf16 %v1550, %v1549
        %v1565 = vpack.c.bf16 %v1552, %v1551
        %v1566 = vpack.c.bf16 %v1554, %v1553
        %v1567 = vpack.c.bf16 %v1556, %v1555
        %v1568 = vpack.c.bf16 %v1558, %v1557
        %v1569 = vpack.c.bf16 %v1560, %v1559
        %v1570 = vpack.c.bf16 %v1562, %v1561
        %v1571 = vld [vmem:[%s7] sm:$0xf]
        %v1572 = vld [vmem:[%s7 + $0x4] sm:$0xf]
        %v1573 = vld [vmem:[%s7 + $0x8] sm:$0xf]
        %v1574 = vld [vmem:[%s7 + $0xc] sm:$0xf]
        %v1579 = vunpack.c.l.b16 %v1571
        %v1580 = vunpack.c.l.b16 %v1572
        %v1581 = vunpack.c.l.b16 %v1573
        %v1582 = vunpack.c.l.b16 %v1574
        %v1583 = vpack.c.b16 %v1580, %v1579
        %v1584 = vpack.c.b16 %v1582, %v1581
        %v1588 = vsel %vm1084, %v1563, 0
        %v1591 = vsel %vm1084, %v1564, 0
        %v1594 = vsel %vm1084, %v1565, 0
        %v1597 = vsel %vm1084, %v1566, 0
        %v1600 = vsel %vm1084, %v1567, 0
        %v1603 = vsel %vm1084, %v1568, 0
        %v1606 = vsel %vm1084, %v1569, 0
        %v1609 = vsel %vm1084, %v1570, 0
        %1611 = vmatprep.subr.bf16.mxu0 0
        %1612 = vmatpush1.bf16.msra.mxu0 0
        %1613 = vmatprep.subr.bf16.mxu0 0
        %1614 = vmatpush1.bf16.msra.mxu0 0
        %1615 = vmatprep.subr.bf16.mxu0 0
        %1616 = vmatpush1.bf16.msra.mxu0 0
        %1617 = vmatprep.subr.bf16.mxu0 0
        %1618 = vmatpush1.bf16.msra.mxu0 0
        %1619 = vmatprep.subr.bf16.mxu0 0
        %1620 = vmatpush1.bf16.msra.mxu0 0
        %1621 = vmatprep.subr.bf16.mxu0 0
        %1622 = vmatpush1.bf16.msra.mxu0 0
        %1623 = vmatprep.subr.bf16.mxu0 0
        %1624 = vmatpush1.bf16.msra.mxu0 %v1584
        %1625 = vmatprep.subr.bf16.mxu0 0
        %1626 = vmatpush1.bf16.msra.mxu0 %v1583
        %1627 = vmatprep.subr.bf16.mxu0 0
        %1628 = vmatpush2.bf16.msra.mxu0 0
        %1629 = vmatprep.subr.bf16.mxu0 0
        %1630 = vmatpush2.bf16.msra.mxu0 0
        %1631 = vmatprep.subr.bf16.mxu0 0
        %1632 = vmatpush2.bf16.msra.mxu0 0
        %1633 = vmatprep.subr.bf16.mxu0 0
        %1634 = vmatpush2.bf16.msra.mxu0 0
        %1635 = vmatprep.subr.bf16.mxu0 0
        %1636 = vmatpush2.bf16.msra.mxu0 0
        %1637 = vmatprep.subr.bf16.mxu0 0
        %1638 = vmatpush2.bf16.msra.mxu0 0
        %1639 = vmatprep.subr.bf16.mxu0 0
        %1640 = vmatpush2.bf16.msra.mxu0 0
        %1641 = vmatprep.subr.bf16.mxu0 0
        %1642 = vmatpush2.bf16.msra.mxu0 0
        %1643 = vmatprep.mubr.bf16.mxu0 0
        %1644 = vmatmul.mubr.bf16.gmra.mxu0 %v1588
        %v1645 = vpop.f32.mrf.mxu0
        %v1646 = vadd.f32 0.0, %v1645
        %v1647 = vpop.f32.mrf.mxu0
        %v1648 = vpop.f32.mrf.mxu0
        %v1649 = vadd.f32 0.0, %v1648
        %v1650 = vpop.f32.mrf.mxu0
        %1651 = vmatprep.mubr.bf16.mxu0 0
        %1652 = vmatmul.mubr.bf16.gmra.mxu0 %v1591
        %v1653 = vpop.f32.mrf.mxu0
        %v1654 = vadd.f32 0.0, %v1653
        %v1655 = vpop.f32.mrf.mxu0
        %v1656 = vpop.f32.mrf.mxu0
        %v1657 = vadd.f32 0.0, %v1656
        %v1658 = vpop.f32.mrf.mxu0
        %1659 = vmatprep.mubr.bf16.mxu0 0
        %1660 = vmatmul.mubr.bf16.gmra.mxu0 %v1594
        %v1661 = vpop.f32.mrf.mxu0
        %v1662 = vadd.f32 0.0, %v1661
        %v1663 = vpop.f32.mrf.mxu0
        %v1664 = vpop.f32.mrf.mxu0
        %v1665 = vadd.f32 0.0, %v1664
        %v1666 = vpop.f32.mrf.mxu0
        %1667 = vmatprep.mubr.bf16.mxu0 0
        %1668 = vmatmul.mubr.bf16.gmra.mxu0 %v1597
        %v1669 = vpop.f32.mrf.mxu0
        %v1670 = vadd.f32 0.0, %v1669
        %v1671 = vpop.f32.mrf.mxu0
        %v1672 = vpop.f32.mrf.mxu0
        %v1673 = vadd.f32 0.0, %v1672
        %v1674 = vpop.f32.mrf.mxu0
        %1675 = vmatprep.mubr.bf16.mxu0 0
        %1676 = vmatmul.mubr.bf16.gmra.mxu0 %v1600
        %v1677 = vpop.f32.mrf.mxu0
        %v1678 = vadd.f32 0.0, %v1677
        %v1679 = vpop.f32.mrf.mxu0
        %v1680 = vpop.f32.mrf.mxu0
        %v1681 = vadd.f32 0.0, %v1680
        %v1682 = vpop.f32.mrf.mxu0
        %1683 = vmatprep.mubr.bf16.mxu0 0
        %1684 = vmatmul.mubr.bf16.gmra.mxu0 %v1603
        %v1685 = vpop.f32.mrf.mxu0
        %v1686 = vadd.f32 0.0, %v1685
        %v1687 = vpop.f32.mrf.mxu0
        %v1688 = vpop.f32.mrf.mxu0
        %v1689 = vadd.f32 0.0, %v1688
        %v1690 = vpop.f32.mrf.mxu0
        %1691 = vmatprep.mubr.bf16.mxu0 0
        %1692 = vmatmul.mubr.bf16.gmra.mxu0 %v1606
        %v1693 = vpop.f32.mrf.mxu0
        %v1694 = vadd.f32 0.0, %v1693
        %v1695 = vpop.f32.mrf.mxu0
        %v1696 = vpop.f32.mrf.mxu0
        %v1697 = vadd.f32 0.0, %v1696
        %v1698 = vpop.f32.mrf.mxu0
        %1699 = vmatprep.mubr.bf16.mxu0 0
        %1700 = vmatmul.mubr.bf16.gmra.mxu0 %v1609
        %v1701 = vpop.f32.mrf.mxu0
        %v1702 = vadd.f32 0.0, %v1701
        %v1703 = vpop.f32.mrf.mxu0
        %v1704 = vpop.f32.mrf.mxu0
        %v1705 = vadd.f32 0.0, %v1704
        %v1706 = vpop.f32.mrf.mxu0
        %1707 = vdwg.mxu0
        %vm1708 = vcmp.ge.s32.totalorder %v655, 2
        %vm1709 = vcmp.ge.s32.totalorder %v656, 2
        %vm1710 = vcmp.ge.s32.totalorder %v657, 2
        %vm1711 = vcmp.ge.s32.totalorder %v658, 2
        %vm1712 = vcmp.ge.s32.totalorder %v659, 2
        %vm1713 = vcmp.ge.s32.totalorder %v660, 2
        %vm1714 = vcmp.ge.s32.totalorder %v661, 2
        %vm1715 = vcmp.ge.s32.totalorder %v662, 2
        %vm1716 = vcmp.ge.s32.totalorder %v663, 2
        %vm1717 = vcmp.ge.s32.totalorder %v664, 2
        %vm1718 = vcmp.ge.s32.totalorder %v665, 2
        %vm1719 = vcmp.ge.s32.totalorder %v666, 2
        %vm1720 = vcmp.ge.s32.totalorder %v667, 2
        %vm1721 = vcmp.ge.s32.totalorder %v668, 2
        %vm1722 = vcmp.ge.s32.totalorder %v669, 2
        %vm1723 = vcmp.ge.s32.totalorder %v670, 2
        %v1724 = vsel %vm1708, 1, 0
        %v1725 = vsel %vm1709, 1, 0
        %v1726 = vsel %vm1710, 1, 0
        %v1727 = vsel %vm1711, 1, 0
        %v1728 = vsel %vm1712, 1, 0
        %v1729 = vsel %vm1713, 1, 0
        %v1730 = vsel %vm1714, 1, 0
        %v1731 = vsel %vm1715, 1, 0
        %v1732 = vsel %vm1716, 1, 0
        %v1733 = vsel %vm1717, 1, 0
        %v1734 = vsel %vm1718, 1, 0
        %v1735 = vsel %vm1719, 1, 0
        %v1736 = vsel %vm1720, 1, 0
        %v1737 = vsel %vm1721, 1, 0
        %v1738 = vsel %vm1722, 1, 0
        %v1739 = vsel %vm1723, 1, 0
        %v1740 = vcvt.s32.f32 %v1724
        %v1741 = vcvt.s32.f32 %v1725
        %v1742 = vcvt.s32.f32 %v1726
        %v1743 = vcvt.s32.f32 %v1727
        %v1744 = vcvt.s32.f32 %v1728
        %v1745 = vcvt.s32.f32 %v1729
        %v1746 = vcvt.s32.f32 %v1730
        %v1747 = vcvt.s32.f32 %v1731
        %v1748 = vcvt.s32.f32 %v1732
        %v1749 = vcvt.s32.f32 %v1733
        %v1750 = vcvt.s32.f32 %v1734
        %v1751 = vcvt.s32.f32 %v1735
        %v1752 = vcvt.s32.f32 %v1736
        %v1753 = vcvt.s32.f32 %v1737
        %v1754 = vcvt.s32.f32 %v1738
        %v1755 = vcvt.s32.f32 %v1739
        %v1756 = vrot.slane %v1646, 6
        %v1757 = vrot.slane %v1649, 6
        %v1758 = vrot.slane %v1654, 6
        %v1759 = vrot.slane %v1657, 6
        %v1760 = vrot.slane %v1662, 6
        %v1761 = vrot.slane %v1665, 6
        %v1762 = vrot.slane %v1670, 6
        %v1763 = vrot.slane %v1673, 6
        %v1764 = vrot.slane %v1678, 6
        %v1765 = vrot.slane %v1681, 6
        %v1766 = vrot.slane %v1686, 6
        %v1767 = vrot.slane %v1689, 6
        %v1768 = vrot.slane %v1694, 6
        %v1769 = vrot.slane %v1697, 6
        %v1770 = vrot.slane %v1702, 6
        %v1771 = vrot.slane %v1705, 6
        %vm1772 = vcmp.lt.s32.totalorder %v463, 2
        %v1773 = vsel %vm1772, %v1770, %v1771
        %v1774 = vsel %vm1772, %v1769, %v1770
        %v1775 = vsel %vm1772, %v1768, %v1769
        %v1776 = vsel %vm1772, %v1767, %v1768
        %v1777 = vsel %vm1772, %v1766, %v1767
        %v1778 = vsel %vm1772, %v1765, %v1766
        %v1779 = vsel %vm1772, %v1764, %v1765
        %v1780 = vsel %vm1772, %v1763, %v1764
        %v1781 = vsel %vm1772, %v1762, %v1763
        %v1782 = vsel %vm1772, %v1761, %v1762
        %v1783 = vsel %vm1772, %v1760, %v1761
        %v1784 = vsel %vm1772, %v1759, %v1760
        %v1785 = vsel %vm1772, %v1758, %v1759
        %v1786 = vsel %vm1772, %v1757, %v1758
        %v1787 = vsel %vm1772, %v1756, %v1757
        %v1788 = vsel %vm1772, %v1771, %v1756
        %v1789 = vmul.f32 %v1788, %v1740
        %v1790 = vmul.f32 %v1787, %v1741
        %v1791 = vmul.f32 %v1786, %v1742
        %v1792 = vmul.f32 %v1785, %v1743
        %v1793 = vmul.f32 %v1784, %v1744
        %v1794 = vmul.f32 %v1783, %v1745
        %v1795 = vmul.f32 %v1782, %v1746
        %v1796 = vmul.f32 %v1781, %v1747
        %v1797 = vmul.f32 %v1780, %v1748
        %v1798 = vmul.f32 %v1779, %v1749
        %v1799 = vmul.f32 %v1778, %v1750
        %v1800 = vmul.f32 %v1777, %v1751
        %v1801 = vmul.f32 %v1776, %v1752
        %v1802 = vmul.f32 %v1775, %v1753
        %v1803 = vmul.f32 %v1774, %v1754
        %v1804 = vmul.f32 %v1773, %v1755
        %s1805 = scalar_lea.vmem %s7, 16
        %v1806 = vld [vmem:[%s1805] sm:$0xf]
        %v1807 = vld [vmem:[%s1805 + $0x4] sm:$0xf]
        %v1808 = vld [vmem:[%s1805 + $0x8] sm:$0xf]
        %v1809 = vld [vmem:[%s1805 + $0xc] sm:$0xf]
        %v1814 = vunpack.c.l.b16 %v1806
        %v1815 = vunpack.c.l.b16 %v1807
        %v1816 = vunpack.c.l.b16 %v1808
        %v1817 = vunpack.c.l.b16 %v1809
        %v1818 = vpack.c.b16 %v1815, %v1814
        %v1819 = vpack.c.b16 %v1817, %v1816
        %1822 = vmatprep.subr.bf16.mxu0 0
        %1823 = vmatpush1.bf16.msra.mxu0 0
        %1824 = vmatprep.subr.bf16.mxu0 0
        %1825 = vmatpush1.bf16.msra.mxu0 0
        %1826 = vmatprep.subr.bf16.mxu0 0
        %1827 = vmatpush1.bf16.msra.mxu0 0
        %1828 = vmatprep.subr.bf16.mxu0 0
        %1829 = vmatpush1.bf16.msra.mxu0 0
        %1830 = vmatprep.subr.bf16.mxu0 0
        %1831 = vmatpush1.bf16.msra.mxu0 0
        %1832 = vmatprep.subr.bf16.mxu0 0
        %1833 = vmatpush1.bf16.msra.mxu0 0
        %1834 = vmatprep.subr.bf16.mxu0 0
        %1835 = vmatpush1.bf16.msra.mxu0 %v1819
        %1836 = vmatprep.subr.bf16.mxu0 0
        %1837 = vmatpush1.bf16.msra.mxu0 %v1818
        %1838 = vmatprep.subr.bf16.mxu0 0
        %1839 = vmatpush2.bf16.msra.mxu0 0
        %1840 = vmatprep.subr.bf16.mxu0 0
        %1841 = vmatpush2.bf16.msra.mxu0 0
        %1842 = vmatprep.subr.bf16.mxu0 0
        %1843 = vmatpush2.bf16.msra.mxu0 0
        %1844 = vmatprep.subr.bf16.mxu0 0
        %1845 = vmatpush2.bf16.msra.mxu0 0
        %1846 = vmatprep.subr.bf16.mxu0 0
        %1847 = vmatpush2.bf16.msra.mxu0 0
        %1848 = vmatprep.subr.bf16.mxu0 0
        %1849 = vmatpush2.bf16.msra.mxu0 0
        %1850 = vmatprep.subr.bf16.mxu0 0
        %1851 = vmatpush2.bf16.msra.mxu0 0
        %1852 = vmatprep.subr.bf16.mxu0 0
        %1853 = vmatpush2.bf16.msra.mxu0 0
        %1854 = vmatprep.mubr.bf16.mxu0 0
        %1855 = vmatmul.mubr.bf16.gmra.mxu0 %v1588
        %v1856 = vpop.f32.mrf.mxu0
        %v1857 = vadd.f32 0.0, %v1856
        %v1858 = vpop.f32.mrf.mxu0
        %v1859 = vpop.f32.mrf.mxu0
        %v1860 = vadd.f32 0.0, %v1859
        %v1861 = vpop.f32.mrf.mxu0
        %1862 = vmatprep.mubr.bf16.mxu0 0
        %1863 = vmatmul.mubr.bf16.gmra.mxu0 %v1591
        %v1864 = vpop.f32.mrf.mxu0
        %v1865 = vadd.f32 0.0, %v1864
        %v1866 = vpop.f32.mrf.mxu0
        %v1867 = vpop.f32.mrf.mxu0
        %v1868 = vadd.f32 0.0, %v1867
        %v1869 = vpop.f32.mrf.mxu0
        %1870 = vmatprep.mubr.bf16.mxu0 0
        %1871 = vmatmul.mubr.bf16.gmra.mxu0 %v1594
        %v1872 = vpop.f32.mrf.mxu0
        %v1873 = vadd.f32 0.0, %v1872
        %v1874 = vpop.f32.mrf.mxu0
        %v1875 = vpop.f32.mrf.mxu0
        %v1876 = vadd.f32 0.0, %v1875
        %v1877 = vpop.f32.mrf.mxu0
        %1878 = vmatprep.mubr.bf16.mxu0 0
        %1879 = vmatmul.mubr.bf16.gmra.mxu0 %v1597
        %v1880 = vpop.f32.mrf.mxu0
        %v1881 = vadd.f32 0.0, %v1880
        %v1882 = vpop.f32.mrf.mxu0
        %v1883 = vpop.f32.mrf.mxu0
        %v1884 = vadd.f32 0.0, %v1883
        %v1885 = vpop.f32.mrf.mxu0
        %1886 = vmatprep.mubr.bf16.mxu0 0
        %1887 = vmatmul.mubr.bf16.gmra.mxu0 %v1600
        %v1888 = vpop.f32.mrf.mxu0
        %v1889 = vadd.f32 0.0, %v1888
        %v1890 = vpop.f32.mrf.mxu0
        %v1891 = vpop.f32.mrf.mxu0
        %v1892 = vadd.f32 0.0, %v1891
        %v1893 = vpop.f32.mrf.mxu0
        %1894 = vmatprep.mubr.bf16.mxu0 0
        %1895 = vmatmul.mubr.bf16.gmra.mxu0 %v1603
        %v1896 = vpop.f32.mrf.mxu0
        %v1897 = vadd.f32 0.0, %v1896
        %v1898 = vpop.f32.mrf.mxu0
        %v1899 = vpop.f32.mrf.mxu0
        %v1900 = vadd.f32 0.0, %v1899
        %v1901 = vpop.f32.mrf.mxu0
        %1902 = vmatprep.mubr.bf16.mxu0 0
        %1903 = vmatmul.mubr.bf16.gmra.mxu0 %v1606
        %v1904 = vpop.f32.mrf.mxu0
        %v1905 = vadd.f32 0.0, %v1904
        %v1906 = vpop.f32.mrf.mxu0
        %v1907 = vpop.f32.mrf.mxu0
        %v1908 = vadd.f32 0.0, %v1907
        %v1909 = vpop.f32.mrf.mxu0
        %1910 = vmatprep.mubr.bf16.mxu0 0
        %1911 = vmatmul.mubr.bf16.gmra.mxu0 %v1609
        %v1912 = vpop.f32.mrf.mxu0
        %v1913 = vadd.f32 0.0, %v1912
        %v1914 = vpop.f32.mrf.mxu0
        %v1915 = vpop.f32.mrf.mxu0
        %v1916 = vadd.f32 0.0, %v1915
        %v1917 = vpop.f32.mrf.mxu0
        %1918 = vdwg.mxu0
        %v1919 = vadd.f32 %v1789, %v1857
        %v1920 = vadd.f32 %v1790, %v1860
        %v1921 = vadd.f32 %v1791, %v1865
        %v1922 = vadd.f32 %v1792, %v1868
        %v1923 = vadd.f32 %v1793, %v1873
        %v1924 = vadd.f32 %v1794, %v1876
        %v1925 = vadd.f32 %v1795, %v1881
        %v1926 = vadd.f32 %v1796, %v1884
        %v1927 = vadd.f32 %v1797, %v1889
        %v1928 = vadd.f32 %v1798, %v1892
        %v1929 = vadd.f32 %v1799, %v1897
        %v1930 = vadd.f32 %v1800, %v1900
        %v1931 = vadd.f32 %v1801, %v1905
        %v1932 = vadd.f32 %v1802, %v1908
        %v1933 = vadd.f32 %v1803, %v1913
        %v1934 = vadd.f32 %v1804, %v1916
        %v1935 = vld [vmem:[%s8] sm:$0x1]
        %v1937 = vlaneseq
        %v1938 = vshrl.u32 %v1937, 7
        %v1939 = vsub.s32 0, %v1938
        %v1940 = vrot.slane %v1935, %v1939
        %v1942 = vadd.f32 %v1919, %v1940
        %v1943 = vadd.f32 %v1920, %v1940
        %v1944 = vadd.f32 %v1921, %v1940
        %v1945 = vadd.f32 %v1922, %v1940
        %v1946 = vadd.f32 %v1923, %v1940
        %v1947 = vadd.f32 %v1924, %v1940
        %v1948 = vadd.f32 %v1925, %v1940
        %v1949 = vadd.f32 %v1926, %v1940
        %v1950 = vadd.f32 %v1927, %v1940
        %v1951 = vadd.f32 %v1928, %v1940
        %v1952 = vadd.f32 %v1929, %v1940
        %v1953 = vadd.f32 %v1930, %v1940
        %v1954 = vadd.f32 %v1931, %v1940
        %v1955 = vadd.f32 %v1932, %v1940
        %v1956 = vadd.f32 %v1933, %v1940
        %v1957 = vadd.f32 %v1934, %v1940
        %v1958 = vmax.f32 %v1942, 0.0
        %v1959 = vmax.f32 %v1943, 0.0
        %v1960 = vmax.f32 %v1944, 0.0
        %v1961 = vmax.f32 %v1945, 0.0
        %v1962 = vmax.f32 %v1946, 0.0
        %v1963 = vmax.f32 %v1947, 0.0
        %v1964 = vmax.f32 %v1948, 0.0
        %v1965 = vmax.f32 %v1949, 0.0
        %v1966 = vmax.f32 %v1950, 0.0
        %v1967 = vmax.f32 %v1951, 0.0
        %v1968 = vmax.f32 %v1952, 0.0
        %v1969 = vmax.f32 %v1953, 0.0
        %v1970 = vmax.f32 %v1954, 0.0
        %v1971 = vmax.f32 %v1955, 0.0
        %v1972 = vmax.f32 %v1956, 0.0
        %v1973 = vmax.f32 %v1957, 0.0
        %v1974 = vpack.c.bf16 %v1959, %v1958
        %v1975 = vpack.c.bf16 %v1961, %v1960
        %v1976 = vpack.c.bf16 %v1963, %v1962
        %v1977 = vpack.c.bf16 %v1965, %v1964
        %v1978 = vpack.c.bf16 %v1967, %v1966
        %v1979 = vpack.c.bf16 %v1969, %v1968
        %v1980 = vpack.c.bf16 %v1971, %v1970
        %v1981 = vpack.c.bf16 %v1973, %v1972
        %v1982 = vld [vmem:[%s9] sm:$0xf]
        %v1983 = vld [vmem:[%s9 + $0x4] sm:$0xf]
        %v1984 = vld [vmem:[%s9 + $0x8] sm:$0xf]
        %v1985 = vld [vmem:[%s9 + $0xc] sm:$0xf]
        %v1990 = vunpack.c.l.b16 %v1982
        %v1991 = vunpack.c.l.b16 %v1983
        %v1992 = vunpack.c.l.b16 %v1984
        %v1993 = vunpack.c.l.b16 %v1985
        %v1994 = vpack.c.b16 %v1991, %v1990
        %v1995 = vpack.c.b16 %v1993, %v1992
        %v1999 = vsel %vm1084, %v1974, 0
        %v2002 = vsel %vm1084, %v1975, 0
        %v2005 = vsel %vm1084, %v1976, 0
        %v2008 = vsel %vm1084, %v1977, 0
        %v2011 = vsel %vm1084, %v1978, 0
        %v2014 = vsel %vm1084, %v1979, 0
        %v2017 = vsel %vm1084, %v1980, 0
        %v2020 = vsel %vm1084, %v1981, 0
        %2022 = vmatprep.subr.bf16.mxu0 0
        %2023 = vmatpush1.bf16.msra.mxu0 0
        %2024 = vmatprep.subr.bf16.mxu0 0
        %2025 = vmatpush1.bf16.msra.mxu0 0
        %2026 = vmatprep.subr.bf16.mxu0 0
        %2027 = vmatpush1.bf16.msra.mxu0 0
        %2028 = vmatprep.subr.bf16.mxu0 0
        %2029 = vmatpush1.bf16.msra.mxu0 0
        %2030 = vmatprep.subr.bf16.mxu0 0
        %2031 = vmatpush1.bf16.msra.mxu0 0
        %2032 = vmatprep.subr.bf16.mxu0 0
        %2033 = vmatpush1.bf16.msra.mxu0 0
        %2034 = vmatprep.subr.bf16.mxu0 0
        %2035 = vmatpush1.bf16.msra.mxu0 %v1995
        %2036 = vmatprep.subr.bf16.mxu0 0
        %2037 = vmatpush1.bf16.msra.mxu0 %v1994
        %2038 = vmatprep.subr.bf16.mxu0 0
        %2039 = vmatpush2.bf16.msra.mxu0 0
        %2040 = vmatprep.subr.bf16.mxu0 0
        %2041 = vmatpush2.bf16.msra.mxu0 0
        %2042 = vmatprep.subr.bf16.mxu0 0
        %2043 = vmatpush2.bf16.msra.mxu0 0
        %2044 = vmatprep.subr.bf16.mxu0 0
        %2045 = vmatpush2.bf16.msra.mxu0 0
        %2046 = vmatprep.subr.bf16.mxu0 0
        %2047 = vmatpush2.bf16.msra.mxu0 0
        %2048 = vmatprep.subr.bf16.mxu0 0
        %2049 = vmatpush2.bf16.msra.mxu0 0
        %2050 = vmatprep.subr.bf16.mxu0 0
        %2051 = vmatpush2.bf16.msra.mxu0 0
        %2052 = vmatprep.subr.bf16.mxu0 0
        %2053 = vmatpush2.bf16.msra.mxu0 0
        %2054 = vmatprep.mubr.bf16.mxu0 0
        %2055 = vmatmul.mubr.bf16.gmra.mxu0 %v1999
        %v2056 = vpop.f32.mrf.mxu0
        %v2057 = vadd.f32 0.0, %v2056
        %v2058 = vpop.f32.mrf.mxu0
        %v2059 = vpop.f32.mrf.mxu0
        %v2060 = vadd.f32 0.0, %v2059
        %v2061 = vpop.f32.mrf.mxu0
        %2062 = vmatprep.mubr.bf16.mxu0 0
        %2063 = vmatmul.mubr.bf16.gmra.mxu0 %v2002
        %v2064 = vpop.f32.mrf.mxu0
        %v2065 = vadd.f32 0.0, %v2064
        %v2066 = vpop.f32.mrf.mxu0
        %v2067 = vpop.f32.mrf.mxu0
        %v2068 = vadd.f32 0.0, %v2067
        %v2069 = vpop.f32.mrf.mxu0
        %2070 = vmatprep.mubr.bf16.mxu0 0
        %2071 = vmatmul.mubr.bf16.gmra.mxu0 %v2005
        %v2072 = vpop.f32.mrf.mxu0
        %v2073 = vadd.f32 0.0, %v2072
        %v2074 = vpop.f32.mrf.mxu0
        %v2075 = vpop.f32.mrf.mxu0
        %v2076 = vadd.f32 0.0, %v2075
        %v2077 = vpop.f32.mrf.mxu0
        %2078 = vmatprep.mubr.bf16.mxu0 0
        %2079 = vmatmul.mubr.bf16.gmra.mxu0 %v2008
        %v2080 = vpop.f32.mrf.mxu0
        %v2081 = vadd.f32 0.0, %v2080
        %v2082 = vpop.f32.mrf.mxu0
        %v2083 = vpop.f32.mrf.mxu0
        %v2084 = vadd.f32 0.0, %v2083
        %v2085 = vpop.f32.mrf.mxu0
        %2086 = vmatprep.mubr.bf16.mxu0 0
        %2087 = vmatmul.mubr.bf16.gmra.mxu0 %v2011
        %v2088 = vpop.f32.mrf.mxu0
        %v2089 = vadd.f32 0.0, %v2088
        %v2090 = vpop.f32.mrf.mxu0
        %v2091 = vpop.f32.mrf.mxu0
        %v2092 = vadd.f32 0.0, %v2091
        %v2093 = vpop.f32.mrf.mxu0
        %2094 = vmatprep.mubr.bf16.mxu0 0
        %2095 = vmatmul.mubr.bf16.gmra.mxu0 %v2014
        %v2096 = vpop.f32.mrf.mxu0
        %v2097 = vadd.f32 0.0, %v2096
        %v2098 = vpop.f32.mrf.mxu0
        %v2099 = vpop.f32.mrf.mxu0
        %v2100 = vadd.f32 0.0, %v2099
        %v2101 = vpop.f32.mrf.mxu0
        %2102 = vmatprep.mubr.bf16.mxu0 0
        %2103 = vmatmul.mubr.bf16.gmra.mxu0 %v2017
        %v2104 = vpop.f32.mrf.mxu0
        %v2105 = vadd.f32 0.0, %v2104
        %v2106 = vpop.f32.mrf.mxu0
        %v2107 = vpop.f32.mrf.mxu0
        %v2108 = vadd.f32 0.0, %v2107
        %v2109 = vpop.f32.mrf.mxu0
        %2110 = vmatprep.mubr.bf16.mxu0 0
        %2111 = vmatmul.mubr.bf16.gmra.mxu0 %v2020
        %v2112 = vpop.f32.mrf.mxu0
        %v2113 = vadd.f32 0.0, %v2112
        %v2114 = vpop.f32.mrf.mxu0
        %v2115 = vpop.f32.mrf.mxu0
        %v2116 = vadd.f32 0.0, %v2115
        %v2117 = vpop.f32.mrf.mxu0
        %2118 = vdwg.mxu0
        %v2119 = vrot.slane %v2057, 6
        %v2120 = vrot.slane %v2060, 6
        %v2121 = vrot.slane %v2065, 6
        %v2122 = vrot.slane %v2068, 6
        %v2123 = vrot.slane %v2073, 6
        %v2124 = vrot.slane %v2076, 6
        %v2125 = vrot.slane %v2081, 6
        %v2126 = vrot.slane %v2084, 6
        %v2127 = vrot.slane %v2089, 6
        %v2128 = vrot.slane %v2092, 6
        %v2129 = vrot.slane %v2097, 6
        %v2130 = vrot.slane %v2100, 6
        %v2131 = vrot.slane %v2105, 6
        %v2132 = vrot.slane %v2108, 6
        %v2133 = vrot.slane %v2113, 6
        %v2134 = vrot.slane %v2116, 6
        %v2135 = vsel %vm1772, %v2133, %v2134
        %v2136 = vsel %vm1772, %v2132, %v2133
        %v2137 = vsel %vm1772, %v2131, %v2132
        %v2138 = vsel %vm1772, %v2130, %v2131
        %v2139 = vsel %vm1772, %v2129, %v2130
        %v2140 = vsel %vm1772, %v2128, %v2129
        %v2141 = vsel %vm1772, %v2127, %v2128
        %v2142 = vsel %vm1772, %v2126, %v2127
        %v2143 = vsel %vm1772, %v2125, %v2126
        %v2144 = vsel %vm1772, %v2124, %v2125
        %v2145 = vsel %vm1772, %v2123, %v2124
        %v2146 = vsel %vm1772, %v2122, %v2123
        %v2147 = vsel %vm1772, %v2121, %v2122
        %v2148 = vsel %vm1772, %v2120, %v2121
        %v2149 = vsel %vm1772, %v2119, %v2120
        %v2150 = vsel %vm1772, %v2134, %v2119
        %v2151 = vmul.f32 %v2150, %v1740
        %v2152 = vmul.f32 %v2149, %v1741
        %v2153 = vmul.f32 %v2148, %v1742
        %v2154 = vmul.f32 %v2147, %v1743
        %v2155 = vmul.f32 %v2146, %v1744
        %v2156 = vmul.f32 %v2145, %v1745
        %v2157 = vmul.f32 %v2144, %v1746
        %v2158 = vmul.f32 %v2143, %v1747
        %v2159 = vmul.f32 %v2142, %v1748
        %v2160 = vmul.f32 %v2141, %v1749
        %v2161 = vmul.f32 %v2140, %v1750
        %v2162 = vmul.f32 %v2139, %v1751
        %v2163 = vmul.f32 %v2138, %v1752
        %v2164 = vmul.f32 %v2137, %v1753
        %v2165 = vmul.f32 %v2136, %v1754
        %v2166 = vmul.f32 %v2135, %v1755
        %s2167 = scalar_lea.vmem %s9, 16
        %v2168 = vld [vmem:[%s2167] sm:$0xf]
        %v2169 = vld [vmem:[%s2167 + $0x4] sm:$0xf]
        %v2170 = vld [vmem:[%s2167 + $0x8] sm:$0xf]
        %v2171 = vld [vmem:[%s2167 + $0xc] sm:$0xf]
        %v2176 = vunpack.c.l.b16 %v2168
        %v2177 = vunpack.c.l.b16 %v2169
        %v2178 = vunpack.c.l.b16 %v2170
        %v2179 = vunpack.c.l.b16 %v2171
        %v2180 = vpack.c.b16 %v2177, %v2176
        %v2181 = vpack.c.b16 %v2179, %v2178
        %2184 = vmatprep.subr.bf16.mxu0 0
        %2185 = vmatpush1.bf16.msra.mxu0 0
        %2186 = vmatprep.subr.bf16.mxu0 0
        %2187 = vmatpush1.bf16.msra.mxu0 0
        %2188 = vmatprep.subr.bf16.mxu0 0
        %2189 = vmatpush1.bf16.msra.mxu0 0
        %2190 = vmatprep.subr.bf16.mxu0 0
        %2191 = vmatpush1.bf16.msra.mxu0 0
        %2192 = vmatprep.subr.bf16.mxu0 0
        %2193 = vmatpush1.bf16.msra.mxu0 0
        %2194 = vmatprep.subr.bf16.mxu0 0
        %2195 = vmatpush1.bf16.msra.mxu0 0
        %2196 = vmatprep.subr.bf16.mxu0 0
        %2197 = vmatpush1.bf16.msra.mxu0 %v2181
        %2198 = vmatprep.subr.bf16.mxu0 0
        %2199 = vmatpush1.bf16.msra.mxu0 %v2180
        %2200 = vmatprep.subr.bf16.mxu0 0
        %2201 = vmatpush2.bf16.msra.mxu0 0
        %2202 = vmatprep.subr.bf16.mxu0 0
        %2203 = vmatpush2.bf16.msra.mxu0 0
        %2204 = vmatprep.subr.bf16.mxu0 0
        %2205 = vmatpush2.bf16.msra.mxu0 0
        %2206 = vmatprep.subr.bf16.mxu0 0
        %2207 = vmatpush2.bf16.msra.mxu0 0
        %2208 = vmatprep.subr.bf16.mxu0 0
        %2209 = vmatpush2.bf16.msra.mxu0 0
        %2210 = vmatprep.subr.bf16.mxu0 0
        %2211 = vmatpush2.bf16.msra.mxu0 0
        %2212 = vmatprep.subr.bf16.mxu0 0
        %2213 = vmatpush2.bf16.msra.mxu0 0
        %2214 = vmatprep.subr.bf16.mxu0 0
        %2215 = vmatpush2.bf16.msra.mxu0 0
        %2216 = vmatprep.mubr.bf16.mxu0 0
        %2217 = vmatmul.mubr.bf16.gmra.mxu0 %v1999
        %v2218 = vpop.f32.mrf.mxu0
        %v2219 = vadd.f32 0.0, %v2218
        %v2220 = vpop.f32.mrf.mxu0
        %v2221 = vpop.f32.mrf.mxu0
        %v2222 = vadd.f32 0.0, %v2221
        %v2223 = vpop.f32.mrf.mxu0
        %2224 = vmatprep.mubr.bf16.mxu0 0
        %2225 = vmatmul.mubr.bf16.gmra.mxu0 %v2002
        %v2226 = vpop.f32.mrf.mxu0
        %v2227 = vadd.f32 0.0, %v2226
        %v2228 = vpop.f32.mrf.mxu0
        %v2229 = vpop.f32.mrf.mxu0
        %v2230 = vadd.f32 0.0, %v2229
        %v2231 = vpop.f32.mrf.mxu0
        %2232 = vmatprep.mubr.bf16.mxu0 0
        %2233 = vmatmul.mubr.bf16.gmra.mxu0 %v2005
        %v2234 = vpop.f32.mrf.mxu0
        %v2235 = vadd.f32 0.0, %v2234
        %v2236 = vpop.f32.mrf.mxu0
        %v2237 = vpop.f32.mrf.mxu0
        %v2238 = vadd.f32 0.0, %v2237
        %v2239 = vpop.f32.mrf.mxu0
        %2240 = vmatprep.mubr.bf16.mxu0 0
        %2241 = vmatmul.mubr.bf16.gmra.mxu0 %v2008
        %v2242 = vpop.f32.mrf.mxu0
        %v2243 = vadd.f32 0.0, %v2242
        %v2244 = vpop.f32.mrf.mxu0
        %v2245 = vpop.f32.mrf.mxu0
        %v2246 = vadd.f32 0.0, %v2245
        %v2247 = vpop.f32.mrf.mxu0
        %2248 = vmatprep.mubr.bf16.mxu0 0
        %2249 = vmatmul.mubr.bf16.gmra.mxu0 %v2011
        %v2250 = vpop.f32.mrf.mxu0
        %v2251 = vadd.f32 0.0, %v2250
        %v2252 = vpop.f32.mrf.mxu0
        %v2253 = vpop.f32.mrf.mxu0
        %v2254 = vadd.f32 0.0, %v2253
        %v2255 = vpop.f32.mrf.mxu0
        %2256 = vmatprep.mubr.bf16.mxu0 0
        %2257 = vmatmul.mubr.bf16.gmra.mxu0 %v2014
        %v2258 = vpop.f32.mrf.mxu0
        %v2259 = vadd.f32 0.0, %v2258
        %v2260 = vpop.f32.mrf.mxu0
        %v2261 = vpop.f32.mrf.mxu0
        %v2262 = vadd.f32 0.0, %v2261
        %v2263 = vpop.f32.mrf.mxu0
        %2264 = vmatprep.mubr.bf16.mxu0 0
        %2265 = vmatmul.mubr.bf16.gmra.mxu0 %v2017
        %v2266 = vpop.f32.mrf.mxu0
        %v2267 = vadd.f32 0.0, %v2266
        %v2268 = vpop.f32.mrf.mxu0
        %v2269 = vpop.f32.mrf.mxu0
        %v2270 = vadd.f32 0.0, %v2269
        %v2271 = vpop.f32.mrf.mxu0
        %2272 = vmatprep.mubr.bf16.mxu0 0
        %2273 = vmatmul.mubr.bf16.gmra.mxu0 %v2020
        %v2274 = vpop.f32.mrf.mxu0
        %v2275 = vadd.f32 0.0, %v2274
        %v2276 = vpop.f32.mrf.mxu0
        %v2277 = vpop.f32.mrf.mxu0
        %v2278 = vadd.f32 0.0, %v2277
        %v2279 = vpop.f32.mrf.mxu0
        %2280 = vdwg.mxu0
        %v2281 = vadd.f32 %v2151, %v2219
        %v2282 = vadd.f32 %v2152, %v2222
        %v2283 = vadd.f32 %v2153, %v2227
        %v2284 = vadd.f32 %v2154, %v2230
        %v2285 = vadd.f32 %v2155, %v2235
        %v2286 = vadd.f32 %v2156, %v2238
        %v2287 = vadd.f32 %v2157, %v2243
        %v2288 = vadd.f32 %v2158, %v2246
        %v2289 = vadd.f32 %v2159, %v2251
        %v2290 = vadd.f32 %v2160, %v2254
        %v2291 = vadd.f32 %v2161, %v2259
        %v2292 = vadd.f32 %v2162, %v2262
        %v2293 = vadd.f32 %v2163, %v2267
        %v2294 = vadd.f32 %v2164, %v2270
        %v2295 = vadd.f32 %v2165, %v2275
        %v2296 = vadd.f32 %v2166, %v2278
        %v2297 = vld [vmem:[%s10] sm:$0x1]
        %v2299 = vlaneseq
        %v2300 = vshrl.u32 %v2299, 7
        %v2301 = vsub.s32 0, %v2300
        %v2302 = vrot.slane %v2297, %v2301
        %v2304 = vadd.f32 %v2281, %v2302
        %v2305 = vadd.f32 %v2282, %v2302
        %v2306 = vadd.f32 %v2283, %v2302
        %v2307 = vadd.f32 %v2284, %v2302
        %v2308 = vadd.f32 %v2285, %v2302
        %v2309 = vadd.f32 %v2286, %v2302
        %v2310 = vadd.f32 %v2287, %v2302
        %v2311 = vadd.f32 %v2288, %v2302
        %v2312 = vadd.f32 %v2289, %v2302
        %v2313 = vadd.f32 %v2290, %v2302
        %v2314 = vadd.f32 %v2291, %v2302
        %v2315 = vadd.f32 %v2292, %v2302
        %v2316 = vadd.f32 %v2293, %v2302
        %v2317 = vadd.f32 %v2294, %v2302
        %v2318 = vadd.f32 %v2295, %v2302
        %v2319 = vadd.f32 %v2296, %v2302
        %v2320 = vmax.f32 %v2304, 0.0
        %v2321 = vmax.f32 %v2305, 0.0
        %v2322 = vmax.f32 %v2306, 0.0
        %v2323 = vmax.f32 %v2307, 0.0
        %v2324 = vmax.f32 %v2308, 0.0
        %v2325 = vmax.f32 %v2309, 0.0
        %v2326 = vmax.f32 %v2310, 0.0
        %v2327 = vmax.f32 %v2311, 0.0
        %v2328 = vmax.f32 %v2312, 0.0
        %v2329 = vmax.f32 %v2313, 0.0
        %v2330 = vmax.f32 %v2314, 0.0
        %v2331 = vmax.f32 %v2315, 0.0
        %v2332 = vmax.f32 %v2316, 0.0
        %v2333 = vmax.f32 %v2317, 0.0
        %v2334 = vmax.f32 %v2318, 0.0
        %v2335 = vmax.f32 %v2319, 0.0
        %v2336 = vadd.f32 %v2320, %v1547
        %v2337 = vadd.f32 %v2321, %v1548
        %v2338 = vadd.f32 %v2322, %v1549
        %v2339 = vadd.f32 %v2323, %v1550
        %v2340 = vadd.f32 %v2324, %v1551
        %v2341 = vadd.f32 %v2325, %v1552
        %v2342 = vadd.f32 %v2326, %v1553
        %v2343 = vadd.f32 %v2327, %v1554
        %v2344 = vadd.f32 %v2328, %v1555
        %v2345 = vadd.f32 %v2329, %v1556
        %v2346 = vadd.f32 %v2330, %v1557
        %v2347 = vadd.f32 %v2331, %v1558
        %v2348 = vadd.f32 %v2332, %v1559
        %v2349 = vadd.f32 %v2333, %v1560
        %v2350 = vadd.f32 %v2334, %v1561
        %v2351 = vadd.f32 %v2335, %v1562
        %v2352 = vmax.f32 %v2336, 0.0
        %v2353 = vmax.f32 %v2337, 0.0
        %v2354 = vmax.f32 %v2338, 0.0
        %v2355 = vmax.f32 %v2339, 0.0
        %v2356 = vmax.f32 %v2340, 0.0
        %v2357 = vmax.f32 %v2341, 0.0
        %v2358 = vmax.f32 %v2342, 0.0
        %v2359 = vmax.f32 %v2343, 0.0
        %v2360 = vmax.f32 %v2344, 0.0
        %v2361 = vmax.f32 %v2345, 0.0
        %v2362 = vmax.f32 %v2346, 0.0
        %v2363 = vmax.f32 %v2347, 0.0
        %v2364 = vmax.f32 %v2348, 0.0
        %v2365 = vmax.f32 %v2349, 0.0
        %v2366 = vmax.f32 %v2350, 0.0
        %v2367 = vmax.f32 %v2351, 0.0
        %v2368 = vpack.c.bf16 %v2353, %v2352
        %v2369 = vpack.c.bf16 %v2355, %v2354
        %v2370 = vpack.c.bf16 %v2357, %v2356
        %v2371 = vpack.c.bf16 %v2359, %v2358
        %v2372 = vpack.c.bf16 %v2361, %v2360
        %v2373 = vpack.c.bf16 %v2363, %v2362
        %v2374 = vpack.c.bf16 %v2365, %v2364
        %v2375 = vpack.c.bf16 %v2367, %v2366
        %v2376 = vld [vmem:[%s11] sm:$0xf]
        %v2377 = vld [vmem:[%s11 + $0x4] sm:$0xf]
        %v2378 = vld [vmem:[%s11 + $0x8] sm:$0xf]
        %v2379 = vld [vmem:[%s11 + $0xc] sm:$0xf]
        %v2380 = vld [vmem:[%s12] sm:$0x1]
        %v2382 = vlaneseq
        %v2383 = vshrl.u32 %v2382, 7
        %v2384 = vsub.s32 0, %v2383
        %v2385 = vrot.slane %v2380, %v2384
        %v2391 = vunpack.c.l.b16 %v2376
        %v2392 = vunpack.c.l.b16 %v2377
        %v2393 = vunpack.c.l.b16 %v2378
        %v2394 = vunpack.c.l.b16 %v2379
        %v2395 = vpack.c.b16 %v2392, %v2391
        %v2396 = vpack.c.b16 %v2394, %v2393
        %v2400 = vsel %vm1084, %v2368, 0
        %v2403 = vsel %vm1084, %v2369, 0
        %v2406 = vsel %vm1084, %v2370, 0
        %v2409 = vsel %vm1084, %v2371, 0
        %v2412 = vsel %vm1084, %v2372, 0
        %v2415 = vsel %vm1084, %v2373, 0
        %v2418 = vsel %vm1084, %v2374, 0
        %v2421 = vsel %vm1084, %v2375, 0
        %2423 = vmatprep.subr.bf16.mxu0 0
        %2424 = vmatpush1.bf16.msra.mxu0 0
        %2425 = vmatprep.subr.bf16.mxu0 0
        %2426 = vmatpush1.bf16.msra.mxu0 0
        %2427 = vmatprep.subr.bf16.mxu0 0
        %2428 = vmatpush1.bf16.msra.mxu0 0
        %2429 = vmatprep.subr.bf16.mxu0 0
        %2430 = vmatpush1.bf16.msra.mxu0 0
        %2431 = vmatprep.subr.bf16.mxu0 0
        %2432 = vmatpush1.bf16.msra.mxu0 0
        %2433 = vmatprep.subr.bf16.mxu0 0
        %2434 = vmatpush1.bf16.msra.mxu0 0
        %2435 = vmatprep.subr.bf16.mxu0 0
        %2436 = vmatpush1.bf16.msra.mxu0 %v2396
        %2437 = vmatprep.subr.bf16.mxu0 0
        %2438 = vmatpush1.bf16.msra.mxu0 %v2395
        %2439 = vmatprep.subr.bf16.mxu0 0
        %2440 = vmatpush2.bf16.msra.mxu0 0
        %2441 = vmatprep.subr.bf16.mxu0 0
        %2442 = vmatpush2.bf16.msra.mxu0 0
        %2443 = vmatprep.subr.bf16.mxu0 0
        %2444 = vmatpush2.bf16.msra.mxu0 0
        %2445 = vmatprep.subr.bf16.mxu0 0
        %2446 = vmatpush2.bf16.msra.mxu0 0
        %2447 = vmatprep.subr.bf16.mxu0 0
        %2448 = vmatpush2.bf16.msra.mxu0 0
        %2449 = vmatprep.subr.bf16.mxu0 0
        %2450 = vmatpush2.bf16.msra.mxu0 0
        %2451 = vmatprep.subr.bf16.mxu0 0
        %2452 = vmatpush2.bf16.msra.mxu0 0
        %2453 = vmatprep.subr.bf16.mxu0 0
        %2454 = vmatpush2.bf16.msra.mxu0 0
        %2455 = vmatprep.mubr.bf16.mxu0 0
        %2456 = vmatmul.mubr.bf16.gmra.mxu0 %v2400
        %v2457 = vpop.f32.mrf.mxu0
        %v2458 = vadd.f32 %v2385, %v2457
        %v2459 = vpop.f32.mrf.mxu0
        %v2460 = vpop.f32.mrf.mxu0
        %v2461 = vadd.f32 %v2385, %v2460
        %v2462 = vpop.f32.mrf.mxu0
        %2463 = vmatprep.mubr.bf16.mxu0 0
        %2464 = vmatmul.mubr.bf16.gmra.mxu0 %v2403
        %v2465 = vpop.f32.mrf.mxu0
        %v2466 = vadd.f32 %v2385, %v2465
        %v2467 = vpop.f32.mrf.mxu0
        %v2468 = vpop.f32.mrf.mxu0
        %v2469 = vadd.f32 %v2385, %v2468
        %v2470 = vpop.f32.mrf.mxu0
        %2471 = vmatprep.mubr.bf16.mxu0 0
        %2472 = vmatmul.mubr.bf16.gmra.mxu0 %v2406
        %v2473 = vpop.f32.mrf.mxu0
        %v2474 = vadd.f32 %v2385, %v2473
        %v2475 = vpop.f32.mrf.mxu0
        %v2476 = vpop.f32.mrf.mxu0
        %v2477 = vadd.f32 %v2385, %v2476
        %v2478 = vpop.f32.mrf.mxu0
        %2479 = vmatprep.mubr.bf16.mxu0 0
        %2480 = vmatmul.mubr.bf16.gmra.mxu0 %v2409
        %v2481 = vpop.f32.mrf.mxu0
        %v2482 = vadd.f32 %v2385, %v2481
        %v2483 = vpop.f32.mrf.mxu0
        %v2484 = vpop.f32.mrf.mxu0
        %v2485 = vadd.f32 %v2385, %v2484
        %v2486 = vpop.f32.mrf.mxu0
        %2487 = vmatprep.mubr.bf16.mxu0 0
        %2488 = vmatmul.mubr.bf16.gmra.mxu0 %v2412
        %v2489 = vpop.f32.mrf.mxu0
        %v2490 = vadd.f32 %v2385, %v2489
        %v2491 = vpop.f32.mrf.mxu0
        %v2492 = vpop.f32.mrf.mxu0
        %v2493 = vadd.f32 %v2385, %v2492
        %v2494 = vpop.f32.mrf.mxu0
        %2495 = vmatprep.mubr.bf16.mxu0 0
        %2496 = vmatmul.mubr.bf16.gmra.mxu0 %v2415
        %v2497 = vpop.f32.mrf.mxu0
        %v2498 = vadd.f32 %v2385, %v2497
        %v2499 = vpop.f32.mrf.mxu0
        %v2500 = vpop.f32.mrf.mxu0
        %v2501 = vadd.f32 %v2385, %v2500
        %v2502 = vpop.f32.mrf.mxu0
        %2503 = vmatprep.mubr.bf16.mxu0 0
        %2504 = vmatmul.mubr.bf16.gmra.mxu0 %v2418
        %v2505 = vpop.f32.mrf.mxu0
        %v2506 = vadd.f32 %v2385, %v2505
        %v2507 = vpop.f32.mrf.mxu0
        %v2508 = vpop.f32.mrf.mxu0
        %v2509 = vadd.f32 %v2385, %v2508
        %v2510 = vpop.f32.mrf.mxu0
        %2511 = vmatprep.mubr.bf16.mxu0 0
        %2512 = vmatmul.mubr.bf16.gmra.mxu0 %v2421
        %v2513 = vpop.f32.mrf.mxu0
        %v2514 = vadd.f32 %v2385, %v2513
        %v2515 = vpop.f32.mrf.mxu0
        %v2516 = vpop.f32.mrf.mxu0
        %v2517 = vadd.f32 %v2385, %v2516
        %v2518 = vpop.f32.mrf.mxu0
        %2519 = vdwg.mxu0
        %2520 = vst [vmem:[%s436] sm:$0xff] %v2458
        %2521 = vst [vmem:[%s436 + $0x8] sm:$0xff] %v2461
        %2522 = vst [vmem:[%s436 + $0x10] sm:$0xff] %v2466
        %2523 = vst [vmem:[%s436 + $0x18] sm:$0xff] %v2469
        %2524 = vst [vmem:[%s436 + $0x20] sm:$0xff] %v2474
        %2525 = vst [vmem:[%s436 + $0x28] sm:$0xff] %v2477
        %2526 = vst [vmem:[%s436 + $0x30] sm:$0xff] %v2482
        %2527 = vst [vmem:[%s436 + $0x38] sm:$0xff] %v2485
        %2528 = vst [vmem:[%s436 + $0x40] sm:$0xff] %v2490
        %2529 = vst [vmem:[%s436 + $0x48] sm:$0xff] %v2493
        %2530 = vst [vmem:[%s436 + $0x50] sm:$0xff] %v2498
        %2531 = vst [vmem:[%s436 + $0x58] sm:$0xff] %v2501
        %2532 = vst [vmem:[%s436 + $0x60] sm:$0xff] %v2506
        %2533 = vst [vmem:[%s436 + $0x68] sm:$0xff] %v2509
        %2534 = vst [vmem:[%s436 + $0x70] sm:$0xff] %v2514
        %2535 = vst [vmem:[%s436 + $0x78] sm:$0xff] %v2517
        %s2536 = sand.u32 %s313, 1
        %s2537 = scalar_lea.sflag [#allocation3], %s2536
        %s2538 = sand.u32 %s313, 1
        %s2539 = smul.addr %s2538, 128
        %s2540 = scalar_lea.vmem [#allocation2], %s2539
        // Predicated region
        $region73: #{tpu_custom_call.1} parent=71 // pred_check
          %p2541 = pneg %p323
        $region74: #{tpu_custom_call.1} parent=71 // pred_check_branch
          %2543 = sbr.rel (%p2541) target = $region76
        $region75: #{tpu_custom_call.1} parent=71 // pred_region
          %s2544 = smul.u32 4, %s27
          %s2546 = ssub.s32 2048, 2048
          %2547 = vsyncadd %s2537, %s2546
          %s2548 = smul.addr %s2544, 4
          %s2549 = smul.addr %s2548, 128
          %s2550 = scalar_lea.hbm %s13, %s2549
          %s2551 = sshll.u32 %s2540, 4
          %s2552 = int_to_ptr.vmem [resolvable:$true] %s2551
          %2557 = dma.vmem_to_hbm [thread:$0]  %s2552, 2048, %s2550, %s2537, 128, 128, 8
        $region76: #{tpu_custom_call.1} parent=71 // pred_fallthru
          _
      $region72: #{tpu_custom_call.1} parent=5 // pred_fallthru
        _
      %p2558 = scmp.le.s32.totalorder 2, %s22
      // Predicated region
      $region77: #{tpu_custom_call.1} parent=5 // pred_check
        %p2559 = pneg %p2558
      $region78: #{tpu_custom_call.1} parent=5 // pred_check_branch
        %2561 = sbr.rel (%p2559) target = $region80
      $region79: #{tpu_custom_call.1} parent=5 // pred_region
        %s2562 = ssub.s32 %s22, 2
        // Predicated region
        $region81: #{tpu_custom_call.1} parent=79 // pred_check
          %p2563 = pneg %p329
        $region82: #{tpu_custom_call.1} parent=79 // pred_check_branch
          %2565 = sbr.rel (%p2563) target = $region84
        $region83: #{tpu_custom_call.1} parent=79 // pred_region
          %s2566 = sand.u32 %s314, 1
          %s2567 = scalar_lea.sflag [#allocation3], %s2566
          %s2568 = sand.u32 %s314, 1
          %s2569 = smul.addr %s2568, 128
          %s2570 = scalar_lea.vmem [#allocation2], %s2569
          %2571 = dma.done %s2567, 2048
        $region84: #{tpu_custom_call.1} parent=79 // pred_fallthru
          _
      $region80: #{tpu_custom_call.1} parent=5 // pred_fallthru
        _
    $region6: #{tpu_custom_call.1} parent=1 // loop_footer
      %s26 = sadd.s32 1, %s22
    $region7: #{tpu_custom_call.1} parent=1 // loop_footer_branch
      %21 = sbr.rel target = $region3
    $region8: #{tpu_custom_call.1} parent=1 // loop_exit
      _
    %2572 = vsyncpa [#allocation3], 1
    %s2573 = scalar_lea.sflag [#allocation3], 1
    %2574 = vsyncpa %s2573, 1

</llo_original>
